<compile_context>
chip_gen: v7x
topology: tpu7x:2x2x1
jax: 0.10.0
libtpu: 0.0.40
codegen_flags: <defaults>
</compile_context>

<pallas_src>
import numpy as np
import jax
import jax.numpy as jnp
from jax.experimental import pallas as pl
from jax.experimental.pallas import tpu as pltpu

QUBITS = 4                    # kernel_size ** 2
DIM = 2 ** QUBITS             # 16
NPAIRS = 6                    # upper-triangular qubit pairs
IMG = 28
KS = 2
GRIDSZ = IMG // KS            # 14
PATCHES = GRIDSZ * GRIDSZ     # 196

# 0-based qubit pairs in the same order as the module's qubit_tuples (1,2)..(3,4)
_PAIR_IDX = [(0, 1), (0, 2), (0, 3), (1, 2), (1, 3), (2, 3)]

# ----------------------------------------------------------------------------
# Static (rx-independent) constants — faithful numpy port of the PyTorch buffers.
# ----------------------------------------------------------------------------
_H2 = np.array([[1, 1], [1, -1]], dtype=np.complex64) / np.sqrt(np.complex64(2.0))
_X2 = np.array([[0, 1], [1, 0]], dtype=np.complex64)
_I2 = np.eye(2, dtype=np.complex64)


def _bin_list(num, length):
    return [int(b) for b in format(num, "0{}b".format(length))]


def _get_cnot(control, target, qubits):
    swap = True
    if control > target:
        swap = False
        control, target = target, control
    diff = target - control
    if diff > 1:
        scaler = np.eye(2 ** (diff - 1))
        upper = np.kron(scaler, _I2)
        lower = np.kron(scaler, _X2)
    else:
        upper = _I2
        lower = _X2
    unitary = (np.kron(np.array([[1, 0], [0, 0]]), upper)
               + np.kron(np.array([[0, 0], [0, 1]]), lower))
    if swap:
        swap_matrix = _H2
        for _ in range(1, diff + 1):
            swap_matrix = np.kron(swap_matrix, _H2)
        unitary = swap_matrix @ unitary @ swap_matrix
    if qubits > diff + 1:
        bits_before = int(control - 1)
        bits_after = int(qubits - target)
        unitary = np.kron(np.eye(2 ** bits_after),
                          np.kron(unitary, np.eye(2 ** bits_before)))
    return unitary.astype(np.complex64)


def _get_cnot_ring(qubits):
    unitary = _get_cnot(1, 2, qubits)
    for i in range(2, qubits):
        unitary = _get_cnot(i, i + 1, qubits) @ unitary
    unitary = _get_cnot(qubits, 1, qubits) @ unitary
    return unitary.astype(np.complex64)


def _get_rzz_static(pair):
    control, target = int(min(pair)), int(max(pair))
    diff = target - control
    upper_diff = 4 - target                      # hard-coded 4 as in the reference
    core = np.array([-1j, 1j, 1j, -1j], dtype=np.complex64)
    operator = np.kron(core, np.ones(2 ** (control - 1)))
    if diff > 1:
        op_upper = operator[: len(operator) // 2]
        op_lower = operator[len(operator) // 2:]
        scaler = np.ones(2 ** (diff - 1))
        upper = np.kron(scaler, op_upper)
        lower = np.kron(scaler, op_lower)
        operator = np.kron(np.array([1, 0]), upper) + np.kron(np.array([0, 1]), lower)
    if upper_diff > 0:
        operator = np.kron(np.ones(2 ** upper_diff), operator)
    return operator.astype(np.complex64)


def _build_static_constants():
    pairs_1b = [(a + 1, b + 1) for (a, b) in _PAIR_IDX]
    s_rzz = np.stack([np.imag(_get_rzz_static(p)) for p in pairs_1b]).astype(np.float32)  # (6,16)

    binary = np.array([_bin_list(k, QUBITS) for k in range(DIM)], dtype=np.float32)
    binary = np.flip(binary, axis=(0, 1))
    rz_static = (-np.ones((DIM, QUBITS), dtype=np.float32) + 2.0 * binary)                # (16,4)

    # theta[n,k] = sum_q (-0.5*rz_static[k,q]) * x_q  +  sum_p (0.5*S[p,k]) * x_a*x_b
    theta_mat = np.zeros((QUBITS + NPAIRS, DIM), dtype=np.float32)
    theta_mat[:QUBITS, :] = -0.5 * rz_static.T
    theta_mat[QUBITS:, :] = 0.5 * s_rzz
    theta_t = np.ascontiguousarray(theta_mat.T).astype(np.float32)                        # (16,10)

    states = np.array([_bin_list(k, QUBITS) for k in range(DIM)], dtype=np.float32)       # (16,4)
    # readout with |0.25*psi|^2 folded in: out = S_read @ [psi_re^2 ; psi_im^2]
    s_read = (0.0625 * np.concatenate([states.T, states.T], axis=1)).astype(np.float32)   # (4,32)

    # Pair-selection matrices: (sel_a @ x)[p] = x_{a_p}, (sel_b @ x)[p] = x_{b_p}
    sel_a = np.zeros((NPAIRS, QUBITS), dtype=np.float32)
    sel_b = np.zeros((NPAIRS, QUBITS), dtype=np.float32)
    for p, (a, b) in enumerate(_PAIR_IDX):
        sel_a[p, a] = 1.0
        sel_b[p, b] = 1.0

    c_ring = _get_cnot_ring(QUBITS)                                                       # (16,16)
    return theta_t, s_read, states, c_ring, sel_a, sel_b


_THETA_T, _S_READ, _STATES, _C_RING, _SEL_A, _SEL_B = _build_static_constants()
_T_LIN = np.ascontiguousarray(_THETA_T[:, :QUBITS])    # (16, 4)
_T_PAIR = np.ascontiguousarray(_THETA_T[:, QUBITS:])   # (16, 6)


# ----------------------------------------------------------------------------
# rx_weight-dependent constants, built with jnp (jittable, differentiable).
# ----------------------------------------------------------------------------
def _rx_kron(rx_weight):
    """U_rx = RX(w3) (x) RX(w2) (x) RX(w1) (x) RX(w0)."""
    half = rx_weight.astype(jnp.float32) * 0.5
    c = jnp.cos(half).astype(jnp.complex64)
    s = jnp.sin(half).astype(jnp.complex64)

    def rx2(q):
        return jnp.stack([jnp.stack([c[q], -1j * s[q]]),
                          jnp.stack([-1j * s[q], c[q]])])

    u = rx2(QUBITS - 1)
    for q in range(QUBITS - 2, -1, -1):
        u = jnp.kron(u, rx2(q))
    return u                                           # (16,16) complex64


def _build_w_parts(rx_weight, dtype):
    """W_cos, W_sin (32,16) s.t. [psi_re; psi_im] = W_cos@cos(theta) + W_sin@sin(theta)."""
    m = jnp.asarray(_C_RING) @ _rx_kron(rx_weight)     # M = CNOTring @ U_rx
    m_re = jnp.real(m).astype(jnp.float32)
    m_im = jnp.imag(m).astype(jnp.float32)
    w_cos = jnp.concatenate([m_re, m_im], axis=0).astype(dtype)    # (32,16)
    w_sin = jnp.concatenate([-m_im, m_re], axis=0).astype(dtype)   # (32,16)
    return w_cos, w_sin


# ----------------------------------------------------------------------------
# Device heuristics (tile size / compute dtype).
# ----------------------------------------------------------------------------
def _device_kind():
    try:
        return jax.devices()[0].device_kind.lower()
    except Exception:
        return ""


def _num_tensorcores():
    kind = _device_kind()
    if any(t in kind for t in ("v7", "7x", "v4", "v5p")):
        return 2
    return 1


def _auto_compute_dtype():
    # bf16 vector path only where the VPU/EUP are bf16-capable (v6e / v7x).
    kind = _device_kind()
    if any(t in kind for t in ("v6", "v7", "7x")):
        return jnp.bfloat16
    return jnp.float32


def _pick_tile(ntot, num_cores):
    if num_cores >= 2:
        # >= 4 grid steps when there is enough work: both cores busy AND each
        # core gets >= 2 steps so per-step DMA / overhead is pipelined away.
        for t in (4096, 2048, 1024, 512, 256):
            if ntot >= 4 * t:
                return t
        return 256
    # Single TensorCore: per-step overhead dominates this compute-light kernel,
    # and per-step VMEM is tiny -> fewest, biggest steps (cap 8192 lanes).
    t = 256 * ((ntot + 255) // 256)
    return int(min(8192, t))


# ----------------------------------------------------------------------------
# Pallas kernels
# ----------------------------------------------------------------------------
def qconv_kernel(x_ref, sela_ref, selb_ref, tlin_ref, tpair_ref,
                 wcos_ref, wsin_ref, sread_ref, o_ref):
    """One lane tile: (4, T) patch values -> (4, T) per-qubit expectations.

    Everything stays in registers (no VMEM scratch round-trips); cross-sublane
    data movement (pair selection, re-stacking) is done with tiny MXU matmuls.
    """
    x = x_ref[...]                                                        # (4, T) f32

    # Pair products x_a * x_b via two (6,4) selection matmuls (MXU is ~idle).
    xa = jnp.dot(sela_ref[...], x, preferred_element_type=jnp.float32)    # (6, T)
    xb = jnp.dot(selb_ref[...], x, preferred_element_type=jnp.float32)    # (6, T)
    prods = xa * xb                                                       # (6, T)

    # Phase angles, accumulated in f32.
    theta = (jnp.dot(tlin_ref[...], x, preferred_element_type=jnp.float32)
             + jnp.dot(tpair_ref[...], prods,
                       preferred_element_type=jnp.float32))               # (16, T)

    # cos/sin on the EUP in the vector compute dtype (bf16 on v6e/v7x, f32 on v5e).
    th = theta.astype(wcos_ref.dtype)
    c = jnp.cos(th)
    s = jnp.sin(th)

    # psi = [Re; Im] of 0.25 * CNOTring @ U_rx @ exp(i*theta); two fused real
    # matmuls with f32 accumulation (0.25^2 folded into s_read).
    psi = (jnp.dot(wcos_ref[...], c, preferred_element_type=jnp.float32)
           + jnp.dot(wsin_ref[...], s, preferred_element_type=jnp.float32))  # (32, T)

    # Readout: per-qubit expectation of |psi|^2.
    o_ref[...] = jnp.dot(sread_ref[...], psi * psi,
                         preferred_element_type=jnp.float32)               # (4, T)


def fc_softmax_kernel(x_ref, w_ref, b_ref, o_ref):
    # x_ref: (784, TB), w_ref: (out, 784), b_ref: (out, 1) -> softmax over out axis.
    logits = jnp.dot(w_ref[...], x_ref[...],
                     preferred_element_type=jnp.float32) + b_ref[...]
    m = jnp.max(logits, axis=0, keepdims=True)
    e = jnp.exp(logits - m)
    inv = pl.reciprocal(jnp.sum(e, axis=0, keepdims=True), approx=True)    # EUP divide
    o_ref[...] = e * inv


# ----------------------------------------------------------------------------
# Wrapper
# ----------------------------------------------------------------------------
def quantum_conv_net(x, rx_weight, fc_w, fc_b, compute_dtype=None, use_pallas_fc=None):
    """x: (B, 1, 28, 28) f32 (NCHW).  Returns (B, out) softmax probabilities."""
    B = x.shape[0]
    out_dim = fc_w.shape[0]
    if compute_dtype is None:
        compute_dtype = _auto_compute_dtype()
    if use_pallas_fc is None:
        use_pallas_fc = B >= 256

    x = x.astype(jnp.float32)

    # nn.Unfold((2,2), stride=2) in lane-dense transposed layout:
    #   x_t[q, p*B + b] = qubit q (= dy*2+dx) of patch p (= h*14+w) of image b
    xr = x.reshape(B, GRIDSZ, KS, GRIDSZ, KS)                       # [b, h, dy, w, dx]
    x_t = jnp.transpose(xr, (2, 4, 1, 3, 0)).reshape(QUBITS, PATCHES * B)

    ntot = PATCHES * B
    tile_n = _pick_tile(ntot, _num_tensorcores())
    ntot_pad = tile_n * pl.cdiv(ntot, tile_n)
    if ntot_pad != ntot:
        x_t = jnp.pad(x_t, ((0, 0), (0, ntot_pad - ntot)))

    sel_a = jnp.asarray(_SEL_A)            # (6, 4)
    sel_b = jnp.asarray(_SEL_B)            # (6, 4)
    t_lin = jnp.asarray(_T_LIN)            # (16, 4)
    t_pair = jnp.asarray(_T_PAIR)          # (16, 6)
    s_read = jnp.asarray(_S_READ)          # (4, 32)  (stays f32)
    w_cos, w_sin = _build_w_parts(rx_weight, compute_dtype)   # (32,16) each

    out_t = pl.pallas_call(
        qconv_kernel,
        out_shape=jax.ShapeDtypeStruct((QUBITS, ntot_pad), jnp.float32),
        grid_spec=pltpu.PrefetchScalarGridSpec(
            num_scalar_prefetch=0,
            grid=(ntot_pad // tile_n,),
            in_specs=[
                pl.BlockSpec((QUBITS, tile_n), lambda i: (0, i)),      # x tile
                pl.BlockSpec((NPAIRS, QUBITS), lambda i: (0, 0)),      # sel_a
                pl.BlockSpec((NPAIRS, QUBITS), lambda i: (0, 0)),      # sel_b
                pl.BlockSpec((DIM, QUBITS), lambda i: (0, 0)),         # t_lin
                pl.BlockSpec((DIM, NPAIRS), lambda i: (0, 0)),         # t_pair
                pl.BlockSpec((2 * DIM, DIM), lambda i: (0, 0)),        # w_cos
                pl.BlockSpec((2 * DIM, DIM), lambda i: (0, 0)),        # w_sin
                pl.BlockSpec((QUBITS, 2 * DIM), lambda i: (0, 0)),     # s_read
            ],
            out_specs=pl.BlockSpec((QUBITS, tile_n), lambda i: (0, i)),
        ),
        compiler_params=pltpu.CompilerParams(dimension_semantics=("parallel",)),
    )(x_t, sel_a, sel_b, t_lin, t_pair, w_cos, w_sin, s_read)

    # (4, p*B+b) -> (784, B) is a pure reshape (row index = q*196 + p); no transpose,
    # and fc1.weight is used as-is.  Padded tail lanes are sliced off here.
    flat_t = out_t[:, :ntot].reshape(QUBITS * PATCHES, B)

    fc_w = fc_w.astype(jnp.float32)
    fc_b = fc_b.astype(jnp.float32)

    if not use_pallas_fc:
        # Small batch: the 10x784xB GEMM + softmax is trivial; a second
        # pallas_call (+ extra HBM round trip) would cost more than it saves.
        logits = jnp.dot(flat_t.T, fc_w.T) + fc_b
        return jax.nn.softmax(logits, axis=-1)

    # Large batch: Pallas FC + softmax tiled over the batch axis (bounded VMEM,
    # pipelined, both v7x TensorCores share the work).
    tile_b = int(min(1024, 128 * pl.cdiv(B, 128)))
    b_pad = tile_b * pl.cdiv(B, tile_b)
    x_fc = flat_t if b_pad == B else jnp.pad(flat_t, ((0, 0), (0, b_pad - B)))

    probs_t = pl.pallas_call(
        fc_softmax_kernel,
        out_shape=jax.ShapeDtypeStruct((out_dim, b_pad), jnp.float32),
        grid_spec=pltpu.PrefetchScalarGridSpec(
            num_scalar_prefetch=0,
            grid=(b_pad // tile_b,),
            in_specs=[
                pl.BlockSpec((QUBITS * PATCHES, tile_b), lambda i: (0, i)),
                pl.BlockSpec((out_dim, QUBITS * PATCHES), lambda i: (0, 0)),
                pl.BlockSpec((out_dim, 1), lambda i: (0, 0)),
            ],
            out_specs=pl.BlockSpec((out_dim, tile_b), lambda i: (0, i)),
        ),
        compiler_params=pltpu.CompilerParams(dimension_semantics=("parallel",)),
    )(x_fc, fc_w, fc_b.reshape(out_dim, 1))

    return jnp.transpose(probs_t[:, :B])          # (B, out)


# ----------------------------------------------------------------------------
# Pure-JAX reference (same math, original layout) for a correctness check.
# ----------------------------------------------------------------------------
def _reference_forward(x, rx_weight, fc_w, fc_b):
    HI = jax.lax.Precision.HIGHEST
    B = x.shape[0]
    xr = x.astype(jnp.float32).reshape(B, GRIDSZ, KS, GRIDSZ, KS)
    p = jnp.transpose(xr, (0, 1, 3, 2, 4)).reshape(B * PATCHES, QUBITS)   # (N, 4)
    cols = [p[:, q] for q in range(QUBITS)]
    feats = jnp.stack(cols + [cols[a] * cols[b] for a, b in _PAIR_IDX], axis=1)  # (N, 10)
    theta = jnp.dot(feats, jnp.asarray(_THETA_T).T, precision=HI)          # (N, 16)
    d = jnp.exp(1j * theta.astype(jnp.complex64))
    m = jnp.asarray(_C_RING) @ _rx_kron(rx_weight)
    psi = 0.25 * jnp.dot(d, m.T, precision=HI)
    probs = jnp.abs(psi) ** 2
    out4 = jnp.dot(probs, jnp.asarray(_STATES), precision=HI)              # (N, 4)
    flat = jnp.transpose(out4.reshape(B, PATCHES, QUBITS), (0, 2, 1)).reshape(B, QUBITS * PATCHES)
    logits = jnp.dot(flat, fc_w.T, precision=HI) + fc_b
    return jax.nn.softmax(logits, axis=-1)


if __name__ == "__main__":
    key = jax.random.PRNGKey(0)
    k_x, k_rx, k_w, k_b = jax.random.split(key, 4)

    B, OUT = 2, 10
    # Module hard-codes 28x28 single-channel input (QuantumConv2d(2, 2, 28)).
    x = jax.random.normal(k_x, (B, 1, IMG, IMG), dtype=jnp.float32)
    rx_weight = jax.random.normal(k_rx, (QUBITS,), dtype=jnp.float32)           # RX.weight
    fc_w = 0.05 * jax.random.normal(k_w, (OUT, IMG * IMG), dtype=jnp.float32)   # fc1.weight
    fc_b = 0.05 * jax.random.normal(k_b, (OUT,), dtype=jnp.float32)             # fc1.bias

    fwd = jax.jit(quantum_conv_net, static_argnames=("compute_dtype", "use_pallas_fc"))

    # Default path (auto dtype, XLA FC at small batch).
    y = fwd(x, rx_weight, fc_w, fc_b)
    jax.block_until_ready(y)
    assert y.shape == (B, OUT)
    assert bool(jnp.all(jnp.isfinite(y)))
    assert bool(jnp.allclose(jnp.sum(y, axis=-1), 1.0, atol=1e-4))

    y_ref = _reference_forward(x, rx_weight, fc_w, fc_b)
    tol = 2.5e-2 if _auto_compute_dtype() == jnp.bfloat16 else 1e-2
    max_diff = float(jnp.max(jnp.abs(y - y_ref)))
    assert max_diff < tol, f"mismatch vs reference, max |diff| = {max_diff}"

    # Also exercise the Pallas FC + softmax path (used for large batches).
    y2 = fwd(x, rx_weight, fc_w, fc_b, use_pallas_fc=True)
    jax.block_until_ready(y2)
    max_diff2 = float(jnp.max(jnp.abs(y2 - y_ref)))
    assert max_diff2 < tol, f"pallas-FC mismatch vs reference, max |diff| = {max_diff2}"

    print("KERNEL_OK")
</pallas_src>

<mosaic_0001>
module attributes {stable_mosaic.version = 11 : i64} {
  func.func @qconv_kernel(%arg0: i32, %arg1: memref<4x512xf32, #tpu.memory_space<vmem>>, %arg2: memref<6x4xf32, #tpu.memory_space<vmem>>, %arg3: memref<6x4xf32, #tpu.memory_space<vmem>>, %arg4: memref<16x4xf32, #tpu.memory_space<vmem>>, %arg5: memref<16x6xf32, #tpu.memory_space<vmem>>, %arg6: memref<32x16xf32, #tpu.memory_space<vmem>>, %arg7: memref<32x16xf32, #tpu.memory_space<vmem>>, %arg8: memref<4x32xf32, #tpu.memory_space<vmem>>, %arg9: memref<4x512xf32, #tpu.memory_space<vmem>>) attributes {dimension_semantics = [#tpu.dimension_semantics<parallel>], iteration_bounds = array<i64: 1>, scalar_prefetch = 0 : i64, scratch_operands = 0 : i64, tpu.core_type = #tpu.core_type<tc>, window_params = [{transform_indices = @transform_0, window_bounds = array<i64: 4, 512>}, {pipeline_mode = #tpu.pipeline_mode<synchronous>, transform_indices = @transform_1, window_bounds = array<i64: 6, 4>}, {pipeline_mode = #tpu.pipeline_mode<synchronous>, transform_indices = @transform_2, window_bounds = array<i64: 6, 4>}, {pipeline_mode = #tpu.pipeline_mode<synchronous>, transform_indices = @transform_3, window_bounds = array<i64: 16, 4>}, {pipeline_mode = #tpu.pipeline_mode<synchronous>, transform_indices = @transform_4, window_bounds = array<i64: 16, 6>}, {pipeline_mode = #tpu.pipeline_mode<synchronous>, transform_indices = @transform_5, window_bounds = array<i64: 32, 16>}, {pipeline_mode = #tpu.pipeline_mode<synchronous>, transform_indices = @transform_6, window_bounds = array<i64: 32, 16>}, {pipeline_mode = #tpu.pipeline_mode<synchronous>, transform_indices = @transform_7, window_bounds = array<i64: 4, 32>}, {transform_indices = @transform_8, window_bounds = array<i64: 4, 512>}]} {
    %c0 = arith.constant 0 : index
    %c0_0 = arith.constant 0 : index
    %0 = vector.load %arg1[%c0, %c0_0] : memref<4x512xf32, #tpu.memory_space<vmem>>, vector<4x512xf32>
    %c0_1 = arith.constant 0 : index
    %c0_2 = arith.constant 0 : index
    %1 = vector.load %arg2[%c0_1, %c0_2] : memref<6x4xf32, #tpu.memory_space<vmem>>, vector<6x4xf32>
    %cst = arith.constant dense<0.000000e+00> : vector<6x512xf32>
    %2 = tpu.matmul %1, %0, %cst {dimension_numbers = #tpu.dot_dimension_numbers<[1], [0], [0], [1], [0, 0, 1, 1], [], []>} : vector<6x4xf32>, vector<4x512xf32>, vector<6x512xf32> -> vector<6x512xf32>
    %c0_3 = arith.constant 0 : index
    %c0_4 = arith.constant 0 : index
    %3 = vector.load %arg3[%c0_3, %c0_4] : memref<6x4xf32, #tpu.memory_space<vmem>>, vector<6x4xf32>
    %cst_5 = arith.constant dense<0.000000e+00> : vector<6x512xf32>
    %4 = tpu.matmul %3, %0, %cst_5 {dimension_numbers = #tpu.dot_dimension_numbers<[1], [0], [0], [1], [0, 0, 1, 1], [], []>} : vector<6x4xf32>, vector<4x512xf32>, vector<6x512xf32> -> vector<6x512xf32>
    %5 = arith.mulf %2, %4 : vector<6x512xf32>
    %c0_6 = arith.constant 0 : index
    %c0_7 = arith.constant 0 : index
    %6 = vector.load %arg4[%c0_6, %c0_7] : memref<16x4xf32, #tpu.memory_space<vmem>>, vector<16x4xf32>
    %cst_8 = arith.constant dense<0.000000e+00> : vector<16x512xf32>
    %7 = tpu.matmul %6, %0, %cst_8 {dimension_numbers = #tpu.dot_dimension_numbers<[1], [0], [0], [1], [0, 0, 1, 1], [], []>} : vector<16x4xf32>, vector<4x512xf32>, vector<16x512xf32> -> vector<16x512xf32>
    %c0_9 = arith.constant 0 : index
    %c0_10 = arith.constant 0 : index
    %8 = vector.load %arg5[%c0_9, %c0_10] : memref<16x6xf32, #tpu.memory_space<vmem>>, vector<16x6xf32>
    %cst_11 = arith.constant dense<0.000000e+00> : vector<16x512xf32>
    %9 = tpu.matmul %8, %5, %cst_11 {dimension_numbers = #tpu.dot_dimension_numbers<[1], [0], [0], [1], [0, 0, 1, 1], [], []>} : vector<16x6xf32>, vector<6x512xf32>, vector<16x512xf32> -> vector<16x512xf32>
    %10 = arith.addf %7, %9 : vector<16x512xf32>
    %11 = math.cos %10 : vector<16x512xf32>
    %12 = math.sin %10 : vector<16x512xf32>
    %c0_12 = arith.constant 0 : index
    %c0_13 = arith.constant 0 : index
    %13 = vector.load %arg6[%c0_12, %c0_13] : memref<32x16xf32, #tpu.memory_space<vmem>>, vector<32x16xf32>
    %cst_14 = arith.constant dense<0.000000e+00> : vector<32x512xf32>
    %14 = tpu.matmul %13, %11, %cst_14 {dimension_numbers = #tpu.dot_dimension_numbers<[1], [0], [0], [1], [0, 0, 1, 1], [], []>} : vector<32x16xf32>, vector<16x512xf32>, vector<32x512xf32> -> vector<32x512xf32>
    %c0_15 = arith.constant 0 : index
    %c0_16 = arith.constant 0 : index
    %15 = vector.load %arg7[%c0_15, %c0_16] : memref<32x16xf32, #tpu.memory_space<vmem>>, vector<32x16xf32>
    %cst_17 = arith.constant dense<0.000000e+00> : vector<32x512xf32>
    %16 = tpu.matmul %15, %12, %cst_17 {dimension_numbers = #tpu.dot_dimension_numbers<[1], [0], [0], [1], [0, 0, 1, 1], [], []>} : vector<32x16xf32>, vector<16x512xf32>, vector<32x512xf32> -> vector<32x512xf32>
    %17 = arith.addf %14, %16 : vector<32x512xf32>
    %c0_18 = arith.constant 0 : index
    %c0_19 = arith.constant 0 : index
    %18 = vector.load %arg8[%c0_18, %c0_19] : memref<4x32xf32, #tpu.memory_space<vmem>>, vector<4x32xf32>
    %19 = arith.mulf %17, %17 : vector<32x512xf32>
    %cst_20 = arith.constant dense<0.000000e+00> : vector<4x512xf32>
    %20 = tpu.matmul %18, %19, %cst_20 {dimension_numbers = #tpu.dot_dimension_numbers<[1], [0], [0], [1], [0, 0, 1, 1], [], []>} : vector<4x32xf32>, vector<32x512xf32>, vector<4x512xf32> -> vector<4x512xf32>
    %c0_21 = arith.constant 0 : index
    %c0_22 = arith.constant 0 : index
    %21 = vector.load %arg9[%c0_21, %c0_22] : memref<4x512xf32, #tpu.memory_space<vmem>>, vector<4x512xf32>
    tpu.vector_store %arg9[%c0_21, %c0_22], %20 {strides = array<i32>} : memref<4x512xf32, #tpu.memory_space<vmem>>, vector<4x512xf32>,
    return
  }
  func.func @transform_0(%arg0: i32) -> (i32, i32) {
    %c0_i32 = arith.constant 0 : i32
    %c0_i32_0 = arith.constant 0 : i32
    return %c0_i32, %arg0 : i32, i32
  }
  func.func @transform_1(%arg0: i32) -> (i32, i32) {
    %c0_i32 = arith.constant 0 : i32
    %c0_i32_0 = arith.constant 0 : i32
    %c0_i32_1 = arith.constant 0 : i32
    return %c0_i32, %c0_i32_0 : i32, i32
  }
  func.func @transform_2(%arg0: i32) -> (i32, i32) {
    %c0_i32 = arith.constant 0 : i32
    %c0_i32_0 = arith.constant 0 : i32
    %c0_i32_1 = arith.constant 0 : i32
    return %c0_i32, %c0_i32_0 : i32, i32
  }
  func.func @transform_3(%arg0: i32) -> (i32, i32) {
    %c0_i32 = arith.constant 0 : i32
    %c0_i32_0 = arith.constant 0 : i32
    %c0_i32_1 = arith.constant 0 : i32
    return %c0_i32, %c0_i32_0 : i32, i32
  }
  func.func @transform_4(%arg0: i32) -> (i32, i32) {
    %c0_i32 = arith.constant 0 : i32
    %c0_i32_0 = arith.constant 0 : i32
    %c0_i32_1 = arith.constant 0 : i32
    return %c0_i32, %c0_i32_0 : i32, i32
  }
  func.func @transform_5(%arg0: i32) -> (i32, i32) {
    %c0_i32 = arith.constant 0 : i32
    %c0_i32_0 = arith.constant 0 : i32
    %c0_i32_1 = arith.constant 0 : i32
    return %c0_i32, %c0_i32_0 : i32, i32
  }
  func.func @transform_6(%arg0: i32) -> (i32, i32) {
    %c0_i32 = arith.constant 0 : i32
    %c0_i32_0 = arith.constant 0 : i32
    %c0_i32_1 = arith.constant 0 : i32
    return %c0_i32, %c0_i32_0 : i32, i32
  }
  func.func @transform_7(%arg0: i32) -> (i32, i32) {
    %c0_i32 = arith.constant 0 : i32
    %c0_i32_0 = arith.constant 0 : i32
    %c0_i32_1 = arith.constant 0 : i32
    return %c0_i32, %c0_i32_0 : i32, i32
  }
  func.func @transform_8(%arg0: i32) -> (i32, i32) {
    %c0_i32 = arith.constant 0 : i32
    %c0_i32_0 = arith.constant 0 : i32
    return %c0_i32, %arg0 : i32, i32
  }
}

</mosaic_0001>

<llo_original>
// kernel: quantum_conv_net.1
$region0: #{quantum_conv_net.1}
  #allocation0 [shape = 'u32[]', space=smem, size = 0x4, offset = 0x4, fixed_abs, tag = 'smem constant byte address 0x4 - core index']
  #allocation1 [shape = 'u32[144,128]{1,0:T(1,128)}', space=vmem, size = 0x12000, scoped, tag = 'internal scratch']
  %s0 = inlined_call_operand.vmem [shape: f32[4,512], index: 0, kind: input, shape index: {}]
  %s1 = inlined_call_operand.vmem [shape: f32[6,4], index: 1, kind: input, shape index: {}]
  %s2 = inlined_call_operand.vmem [shape: f32[6,4], index: 2, kind: input, shape index: {}]
  %s3 = inlined_call_operand.vmem [shape: f32[16,4], index: 3, kind: input, shape index: {}]
  %s4 = inlined_call_operand.vmem [shape: f32[16,6], index: 4, kind: input, shape index: {}]
  %s5 = inlined_call_operand.vmem [shape: f32[32,16], index: 5, kind: input, shape index: {}]
  %s6 = inlined_call_operand.vmem [shape: f32[32,16], index: 6, kind: input, shape index: {}]
  %s7 = inlined_call_operand.vmem [shape: f32[4,32], index: 7, kind: input, shape index: {}]
  %s8 = inlined_call_operand.vmem [shape: f32[4,512], index: 8, kind: output, shape index: {}]
  %s9 = sld [smem:[#allocation0]]
  $region42: #{quantum_conv_net.1} parent=0
    _
  %s11 = ssub.s32 1, %s9
  %s12 = scalar_select 0, %s11, %s9
  // Predicated region
  $region2: #{quantum_conv_net.1} parent=0 // pred_check
    _
  $region3: #{quantum_conv_net.1} parent=0 // pred_check_branch
    %14 = sbr.rel (0) target = $region5
  $region4: #{quantum_conv_net.1} parent=0 // pred_region
    _
  $region5: #{quantum_conv_net.1} parent=0 // pred_fallthru
    _
  // Predicated region
  $region6: #{quantum_conv_net.1} parent=0 // pred_check
    _
  $region7: #{quantum_conv_net.1} parent=0 // pred_check_branch
    %16 = sbr.rel (0) target = $region9
  $region8: #{quantum_conv_net.1} parent=0 // pred_region
    _
  $region9: #{quantum_conv_net.1} parent=0 // pred_fallthru
    _
  // Predicated region
  $region10: #{quantum_conv_net.1} parent=0 // pred_check
    _
  $region11: #{quantum_conv_net.1} parent=0 // pred_check_branch
    %18 = sbr.rel (0) target = $region13
  $region12: #{quantum_conv_net.1} parent=0 // pred_region
    _
  $region13: #{quantum_conv_net.1} parent=0 // pred_fallthru
    _
  // Predicated region
  $region14: #{quantum_conv_net.1} parent=0 // pred_check
    _
  $region15: #{quantum_conv_net.1} parent=0 // pred_check_branch
    %20 = sbr.rel (0) target = $region17
  $region16: #{quantum_conv_net.1} parent=0 // pred_region
    _
  $region17: #{quantum_conv_net.1} parent=0 // pred_fallthru
    _
  // Predicated region
  $region18: #{quantum_conv_net.1} parent=0 // pred_check
    _
  $region19: #{quantum_conv_net.1} parent=0 // pred_check_branch
    %22 = sbr.rel (0) target = $region21
  $region20: #{quantum_conv_net.1} parent=0 // pred_region
    _
  $region21: #{quantum_conv_net.1} parent=0 // pred_fallthru
    _
  // Predicated region
  $region22: #{quantum_conv_net.1} parent=0 // pred_check
    _
  $region23: #{quantum_conv_net.1} parent=0 // pred_check_branch
    %24 = sbr.rel (0) target = $region25
  $region24: #{quantum_conv_net.1} parent=0 // pred_region
    _
  $region25: #{quantum_conv_net.1} parent=0 // pred_fallthru
    _
  // Predicated region
  $region26: #{quantum_conv_net.1} parent=0 // pred_check
    _
  $region27: #{quantum_conv_net.1} parent=0 // pred_check_branch
    %26 = sbr.rel (0) target = $region29
  $region28: #{quantum_conv_net.1} parent=0 // pred_region
    _
  $region29: #{quantum_conv_net.1} parent=0 // pred_fallthru
    _
  // Predicated region
  $region30: #{quantum_conv_net.1} parent=0 // pred_check
    _
  $region31: #{quantum_conv_net.1} parent=0 // pred_check_branch
    %28 = sbr.rel (0) target = $region33
  $region32: #{quantum_conv_net.1} parent=0 // pred_region
    _
  $region33: #{quantum_conv_net.1} parent=0 // pred_fallthru
    _
  %v29 = vld [vmem:[%s0] sm:$0xff]
  %v30 = vld [vmem:[%s0 + $0x8] sm:$0xff]
  %v31 = vld [vmem:[%s1] sm:$0x3f]
  %v34 = vcombine.high %v29, %v29
  %v35 = vcombine.high %v30, %v30
  %vm36 = vcmask 31744
  %v38 = vsel %vm36, %v31, 0
  %vm40 = vcmask 1043456
  %v41 = vsel %vm40, %v29, 0
  %v43 = vsel %vm40, %v34, 0
  %v45 = vsel %vm40, %v30, 0
  %v47 = vsel %vm40, %v35, 0
  %49 = vmatprep.subr.mxu0 %v43
  %50 = vmatpush1.msra.mxu0 %v41
  %51 = vmatprep.subr.mxu0 0.0
  %52 = vmatpush1.msra.mxu0 0.0
  %53 = vmatprep.subr.mxu0 0.0
  %54 = vmatpush1.msra.mxu0 0.0
  %55 = vmatprep.subr.mxu0 0.0
  %56 = vmatpush1.msra.mxu0 0.0
  %57 = vmatprep.subr.mxu0 0.0
  %58 = vmatpush1.msra.mxu0 0.0
  %59 = vmatprep.subr.mxu0 0.0
  %60 = vmatpush1.msra.mxu0 0.0
  %61 = vmatprep.subr.mxu0 0.0
  %62 = vmatpush1.msra.mxu0 0.0
  %63 = vmatprep.subr.mxu0 0.0
  %64 = vmatpush1.msra.mxu0 0.0
  %65 = vmatprep.subr.mxu0 0.0
  %66 = vmatpush1.msra.mxu0 0.0
  %67 = vmatprep.subr.mxu0 0.0
  %68 = vmatpush1.msra.mxu0 0.0
  %69 = vmatprep.subr.mxu0 0.0
  %70 = vmatpush1.msra.mxu0 0.0
  %71 = vmatprep.subr.mxu0 0.0
  %72 = vmatpush1.msra.mxu0 0.0
  %73 = vmatprep.subr.mxu0 0.0
  %74 = vmatpush1.msra.mxu0 0.0
  %75 = vmatprep.subr.mxu0 0.0
  %76 = vmatpush1.msra.mxu0 0.0
  %77 = vmatprep.subr.mxu0 0.0
  %78 = vmatpush1.msra.mxu0 0.0
  %79 = vmatprep.subr.mxu0 0.0
  %80 = vmatpush1.msra.mxu0 0.0
  %81 = vmatprep.subr.mxu0 0.0
  %82 = vmatpush1.msra.mxu0 0.0
  %83 = vmatprep.subr.mxu0 0.0
  %84 = vmatpush1.msra.mxu0 0.0
  %85 = vmatprep.subr.mxu0 0.0
  %86 = vmatpush1.msra.mxu0 0.0
  %87 = vmatprep.subr.mxu0 0.0
  %88 = vmatpush1.msra.mxu0 0.0
  %89 = vmatprep.subr.mxu0 0.0
  %90 = vmatpush1.msra.mxu0 0.0
  %91 = vmatprep.subr.mxu0 0.0
  %92 = vmatpush1.msra.mxu0 0.0
  %93 = vmatprep.subr.mxu0 0.0
  %94 = vmatpush1.msra.mxu0 0.0
  %95 = vmatprep.subr.mxu0 0.0
  %96 = vmatpush1.msra.mxu0 0.0
  %97 = vmatprep.subr.mxu0 0.0
  %98 = vmatpush1.msra.mxu0 0.0
  %99 = vmatprep.subr.mxu0 0.0
  %100 = vmatpush1.msra.mxu0 0.0
  %101 = vmatprep.subr.mxu0 0.0
  %102 = vmatpush1.msra.mxu0 0.0
  %103 = vmatprep.subr.mxu0 0.0
  %104 = vmatpush1.msra.mxu0 0.0
  %105 = vmatprep.subr.mxu0 0.0
  %106 = vmatpush1.msra.mxu0 0.0
  %107 = vmatprep.subr.mxu0 0.0
  %108 = vmatpush1.msra.mxu0 0.0
  %109 = vmatprep.subr.mxu0 0.0
  %110 = vmatpush1.msra.mxu0 0.0
  %111 = vmatprep.subr.mxu0 0.0
  %112 = vmatpush1.msra.mxu0 0.0
  %113 = vmatprep.mubr.f32.mxu0 0.0
  %114 = vmatmul.mubr.f32.gmra.mrb[0].mxu0 %v38
  %v115 = vpop.f32.mrb[0].mxu0
  %v116 = vadd.f32 0.0, %v115
  %v117 = vpop.f32.mrb[0].mxu0
  %v118 = vadd.f32 0.0, %v117
  %119 = vdwg.mxu0
  %120 = vmatprep.subr.mxu0 %v47
  %121 = vmatpush1.msra.mxu0 %v45
  %122 = vmatprep.subr.mxu0 0.0
  %123 = vmatpush1.msra.mxu0 0.0
  %124 = vmatprep.subr.mxu0 0.0
  %125 = vmatpush1.msra.mxu0 0.0
  %126 = vmatprep.subr.mxu0 0.0
  %127 = vmatpush1.msra.mxu0 0.0
  %128 = vmatprep.subr.mxu0 0.0
  %129 = vmatpush1.msra.mxu0 0.0
  %130 = vmatprep.subr.mxu0 0.0
  %131 = vmatpush1.msra.mxu0 0.0
  %132 = vmatprep.subr.mxu0 0.0
  %133 = vmatpush1.msra.mxu0 0.0
  %134 = vmatprep.subr.mxu0 0.0
  %135 = vmatpush1.msra.mxu0 0.0
  %136 = vmatprep.subr.mxu0 0.0
  %137 = vmatpush1.msra.mxu0 0.0
  %138 = vmatprep.subr.mxu0 0.0
  %139 = vmatpush1.msra.mxu0 0.0
  %140 = vmatprep.subr.mxu0 0.0
  %141 = vmatpush1.msra.mxu0 0.0
  %142 = vmatprep.subr.mxu0 0.0
  %143 = vmatpush1.msra.mxu0 0.0
  %144 = vmatprep.subr.mxu0 0.0
  %145 = vmatpush1.msra.mxu0 0.0
  %146 = vmatprep.subr.mxu0 0.0
  %147 = vmatpush1.msra.mxu0 0.0
  %148 = vmatprep.subr.mxu0 0.0
  %149 = vmatpush1.msra.mxu0 0.0
  %150 = vmatprep.subr.mxu0 0.0
  %151 = vmatpush1.msra.mxu0 0.0
  %152 = vmatprep.subr.mxu0 0.0
  %153 = vmatpush1.msra.mxu0 0.0
  %154 = vmatprep.subr.mxu0 0.0
  %155 = vmatpush1.msra.mxu0 0.0
  %156 = vmatprep.subr.mxu0 0.0
  %157 = vmatpush1.msra.mxu0 0.0
  %158 = vmatprep.subr.mxu0 0.0
  %159 = vmatpush1.msra.mxu0 0.0
  %160 = vmatprep.subr.mxu0 0.0
  %161 = vmatpush1.msra.mxu0 0.0
  %162 = vmatprep.subr.mxu0 0.0
  %163 = vmatpush1.msra.mxu0 0.0
  %164 = vmatprep.subr.mxu0 0.0
  %165 = vmatpush1.msra.mxu0 0.0
  %166 = vmatprep.subr.mxu0 0.0
  %167 = vmatpush1.msra.mxu0 0.0
  %168 = vmatprep.subr.mxu0 0.0
  %169 = vmatpush1.msra.mxu0 0.0
  %170 = vmatprep.subr.mxu0 0.0
  %171 = vmatpush1.msra.mxu0 0.0
  %172 = vmatprep.subr.mxu0 0.0
  %173 = vmatpush1.msra.mxu0 0.0
  %174 = vmatprep.subr.mxu0 0.0
  %175 = vmatpush1.msra.mxu0 0.0
  %176 = vmatprep.subr.mxu0 0.0
  %177 = vmatpush1.msra.mxu0 0.0
  %178 = vmatprep.subr.mxu0 0.0
  %179 = vmatpush1.msra.mxu0 0.0
  %180 = vmatprep.subr.mxu0 0.0
  %181 = vmatpush1.msra.mxu0 0.0
  %182 = vmatprep.subr.mxu0 0.0
  %183 = vmatpush1.msra.mxu0 0.0
  %184 = vmatprep.mubr.f32.mxu0 0.0
  %185 = vmatmul.mubr.f32.gmra.mrb[0].mxu0 %v38
  %v186 = vpop.f32.mrb[0].mxu0
  %v187 = vadd.f32 0.0, %v186
  %v188 = vpop.f32.mrb[0].mxu0
  %v189 = vadd.f32 0.0, %v188
  %190 = vdwg.mxu0
  %v191 = vld [vmem:[%s2] sm:$0x3f]
  %v193 = vsel %vm36, %v191, 0
  %195 = vmatprep.subr.mxu0 %v43
  %196 = vmatpush1.msra.mxu0 %v41
  %197 = vmatprep.subr.mxu0 0.0
  %198 = vmatpush1.msra.mxu0 0.0
  %199 = vmatprep.subr.mxu0 0.0
  %200 = vmatpush1.msra.mxu0 0.0
  %201 = vmatprep.subr.mxu0 0.0
  %202 = vmatpush1.msra.mxu0 0.0
  %203 = vmatprep.subr.mxu0 0.0
  %204 = vmatpush1.msra.mxu0 0.0
  %205 = vmatprep.subr.mxu0 0.0
  %206 = vmatpush1.msra.mxu0 0.0
  %207 = vmatprep.subr.mxu0 0.0
  %208 = vmatpush1.msra.mxu0 0.0
  %209 = vmatprep.subr.mxu0 0.0
  %210 = vmatpush1.msra.mxu0 0.0
  %211 = vmatprep.subr.mxu0 0.0
  %212 = vmatpush1.msra.mxu0 0.0
  %213 = vmatprep.subr.mxu0 0.0
  %214 = vmatpush1.msra.mxu0 0.0
  %215 = vmatprep.subr.mxu0 0.0
  %216 = vmatpush1.msra.mxu0 0.0
  %217 = vmatprep.subr.mxu0 0.0
  %218 = vmatpush1.msra.mxu0 0.0
  %219 = vmatprep.subr.mxu0 0.0
  %220 = vmatpush1.msra.mxu0 0.0
  %221 = vmatprep.subr.mxu0 0.0
  %222 = vmatpush1.msra.mxu0 0.0
  %223 = vmatprep.subr.mxu0 0.0
  %224 = vmatpush1.msra.mxu0 0.0
  %225 = vmatprep.subr.mxu0 0.0
  %226 = vmatpush1.msra.mxu0 0.0
  %227 = vmatprep.subr.mxu0 0.0
  %228 = vmatpush1.msra.mxu0 0.0
  %229 = vmatprep.subr.mxu0 0.0
  %230 = vmatpush1.msra.mxu0 0.0
  %231 = vmatprep.subr.mxu0 0.0
  %232 = vmatpush1.msra.mxu0 0.0
  %233 = vmatprep.subr.mxu0 0.0
  %234 = vmatpush1.msra.mxu0 0.0
  %235 = vmatprep.subr.mxu0 0.0
  %236 = vmatpush1.msra.mxu0 0.0
  %237 = vmatprep.subr.mxu0 0.0
  %238 = vmatpush1.msra.mxu0 0.0
  %239 = vmatprep.subr.mxu0 0.0
  %240 = vmatpush1.msra.mxu0 0.0
  %241 = vmatprep.subr.mxu0 0.0
  %242 = vmatpush1.msra.mxu0 0.0
  %243 = vmatprep.subr.mxu0 0.0
  %244 = vmatpush1.msra.mxu0 0.0
  %245 = vmatprep.subr.mxu0 0.0
  %246 = vmatpush1.msra.mxu0 0.0
  %247 = vmatprep.subr.mxu0 0.0
  %248 = vmatpush1.msra.mxu0 0.0
  %249 = vmatprep.subr.mxu0 0.0
  %250 = vmatpush1.msra.mxu0 0.0
  %251 = vmatprep.subr.mxu0 0.0
  %252 = vmatpush1.msra.mxu0 0.0
  %253 = vmatprep.subr.mxu0 0.0
  %254 = vmatpush1.msra.mxu0 0.0
  %255 = vmatprep.subr.mxu0 0.0
  %256 = vmatpush1.msra.mxu0 0.0
  %257 = vmatprep.subr.mxu0 0.0
  %258 = vmatpush1.msra.mxu0 0.0
  %259 = vmatprep.mubr.f32.mxu0 0.0
  %260 = vmatmul.mubr.f32.gmra.mrb[0].mxu0 %v193
  %v261 = vpop.f32.mrb[0].mxu0
  %v262 = vadd.f32 0.0, %v261
  %v263 = vpop.f32.mrb[0].mxu0
  %v264 = vadd.f32 0.0, %v263
  %265 = vdwg.mxu0
  %266 = vmatprep.subr.mxu0 %v47
  %267 = vmatpush1.msra.mxu0 %v45
  %268 = vmatprep.subr.mxu0 0.0
  %269 = vmatpush1.msra.mxu0 0.0
  %270 = vmatprep.subr.mxu0 0.0
  %271 = vmatpush1.msra.mxu0 0.0
  %272 = vmatprep.subr.mxu0 0.0
  %273 = vmatpush1.msra.mxu0 0.0
  %274 = vmatprep.subr.mxu0 0.0
  %275 = vmatpush1.msra.mxu0 0.0
  %276 = vmatprep.subr.mxu0 0.0
  %277 = vmatpush1.msra.mxu0 0.0
  %278 = vmatprep.subr.mxu0 0.0
  %279 = vmatpush1.msra.mxu0 0.0
  %280 = vmatprep.subr.mxu0 0.0
  %281 = vmatpush1.msra.mxu0 0.0
  %282 = vmatprep.subr.mxu0 0.0
  %283 = vmatpush1.msra.mxu0 0.0
  %284 = vmatprep.subr.mxu0 0.0
  %285 = vmatpush1.msra.mxu0 0.0
  %286 = vmatprep.subr.mxu0 0.0
  %287 = vmatpush1.msra.mxu0 0.0
  %288 = vmatprep.subr.mxu0 0.0
  %289 = vmatpush1.msra.mxu0 0.0
  %290 = vmatprep.subr.mxu0 0.0
  %291 = vmatpush1.msra.mxu0 0.0
  %292 = vmatprep.subr.mxu0 0.0
  %293 = vmatpush1.msra.mxu0 0.0
  %294 = vmatprep.subr.mxu0 0.0
  %295 = vmatpush1.msra.mxu0 0.0
  %296 = vmatprep.subr.mxu0 0.0
  %297 = vmatpush1.msra.mxu0 0.0
  %298 = vmatprep.subr.mxu0 0.0
  %299 = vmatpush1.msra.mxu0 0.0
  %300 = vmatprep.subr.mxu0 0.0
  %301 = vmatpush1.msra.mxu0 0.0
  %302 = vmatprep.subr.mxu0 0.0
  %303 = vmatpush1.msra.mxu0 0.0
  %304 = vmatprep.subr.mxu0 0.0
  %305 = vmatpush1.msra.mxu0 0.0
  %306 = vmatprep.subr.mxu0 0.0
  %307 = vmatpush1.msra.mxu0 0.0
  %308 = vmatprep.subr.mxu0 0.0
  %309 = vmatpush1.msra.mxu0 0.0
  %310 = vmatprep.subr.mxu0 0.0
  %311 = vmatpush1.msra.mxu0 0.0
  %312 = vmatprep.subr.mxu0 0.0
  %313 = vmatpush1.msra.mxu0 0.0
  %314 = vmatprep.subr.mxu0 0.0
  %315 = vmatpush1.msra.mxu0 0.0
  %316 = vmatprep.subr.mxu0 0.0
  %317 = vmatpush1.msra.mxu0 0.0
  %318 = vmatprep.subr.mxu0 0.0
  %319 = vmatpush1.msra.mxu0 0.0
  %320 = vmatprep.subr.mxu0 0.0
  %321 = vmatpush1.msra.mxu0 0.0
  %322 = vmatprep.subr.mxu0 0.0
  %323 = vmatpush1.msra.mxu0 0.0
  %324 = vmatprep.subr.mxu0 0.0
  %325 = vmatpush1.msra.mxu0 0.0
  %326 = vmatprep.subr.mxu0 0.0
  %327 = vmatpush1.msra.mxu0 0.0
  %328 = vmatprep.subr.mxu0 0.0
  %329 = vmatpush1.msra.mxu0 0.0
  %330 = vmatprep.mubr.f32.mxu0 0.0
  %331 = vmatmul.mubr.f32.gmra.mrb[0].mxu0 %v193
  %v332 = vpop.f32.mrb[0].mxu0
  %v333 = vadd.f32 0.0, %v332
  %v334 = vpop.f32.mrb[0].mxu0
  %v335 = vadd.f32 0.0, %v334
  %336 = vdwg.mxu0
  %v337 = vmul.f32 %v116, %v262
  %v338 = vmul.f32 %v118, %v264
  %v339 = vmul.f32 %v187, %v333
  %v340 = vmul.f32 %v189, %v335
  %v341 = vld [vmem:[%s3] sm:$0xff]
  %v342 = vld [vmem:[%s3 + $0x8] sm:$0xff]
  %v343 = vld [vmem:[%s4] sm:$0xff]
  %v344 = vld [vmem:[%s4 + $0x8] sm:$0xff]
  %vm345 = vcmask 48128
  %v347 = vsel %vm345, %v343, 0
  %v350 = vsel %vm345, %v344, 0
  %vm352 = vcmask 1045504
  %v354 = vsel %vm352, %v337, 0
  %v357 = vsel %vm352, %v338, 0
  %v360 = vsel %vm352, %v339, 0
  %v363 = vsel %vm352, %v340, 0
  %365 = vmatprep.subr.mxu0 %v357
  %366 = vmatpush1.msra.mxu0 %v354
  %367 = vmatprep.subr.mxu0 0.0
  %368 = vmatpush1.msra.mxu0 0.0
  %369 = vmatprep.subr.mxu0 0.0
  %370 = vmatpush1.msra.mxu0 0.0
  %371 = vmatprep.subr.mxu0 0.0
  %372 = vmatpush1.msra.mxu0 0.0
  %373 = vmatprep.subr.mxu0 0.0
  %374 = vmatpush1.msra.mxu0 0.0
  %375 = vmatprep.subr.mxu0 0.0
  %376 = vmatpush1.msra.mxu0 0.0
  %377 = vmatprep.subr.mxu0 0.0
  %378 = vmatpush1.msra.mxu0 0.0
  %379 = vmatprep.subr.mxu0 0.0
  %380 = vmatpush1.msra.mxu0 0.0
  %381 = vmatprep.subr.mxu0 0.0
  %382 = vmatpush1.msra.mxu0 0.0
  %383 = vmatprep.subr.mxu0 0.0
  %384 = vmatpush1.msra.mxu0 0.0
  %385 = vmatprep.subr.mxu0 0.0
  %386 = vmatpush1.msra.mxu0 0.0
  %387 = vmatprep.subr.mxu0 0.0
  %388 = vmatpush1.msra.mxu0 0.0
  %389 = vmatprep.subr.mxu0 0.0
  %390 = vmatpush1.msra.mxu0 0.0
  %391 = vmatprep.subr.mxu0 0.0
  %392 = vmatpush1.msra.mxu0 0.0
  %393 = vmatprep.subr.mxu0 0.0
  %394 = vmatpush1.msra.mxu0 0.0
  %395 = vmatprep.subr.mxu0 0.0
  %396 = vmatpush1.msra.mxu0 0.0
  %397 = vmatprep.subr.mxu0 0.0
  %398 = vmatpush1.msra.mxu0 0.0
  %399 = vmatprep.subr.mxu0 0.0
  %400 = vmatpush1.msra.mxu0 0.0
  %401 = vmatprep.subr.mxu0 0.0
  %402 = vmatpush1.msra.mxu0 0.0
  %403 = vmatprep.subr.mxu0 0.0
  %404 = vmatpush1.msra.mxu0 0.0
  %405 = vmatprep.subr.mxu0 0.0
  %406 = vmatpush1.msra.mxu0 0.0
  %407 = vmatprep.subr.mxu0 0.0
  %408 = vmatpush1.msra.mxu0 0.0
  %409 = vmatprep.subr.mxu0 0.0
  %410 = vmatpush1.msra.mxu0 0.0
  %411 = vmatprep.subr.mxu0 0.0
  %412 = vmatpush1.msra.mxu0 0.0
  %413 = vmatprep.subr.mxu0 0.0
  %414 = vmatpush1.msra.mxu0 0.0
  %415 = vmatprep.subr.mxu0 0.0
  %416 = vmatpush1.msra.mxu0 0.0
  %417 = vmatprep.subr.mxu0 0.0
  %418 = vmatpush1.msra.mxu0 0.0
  %419 = vmatprep.subr.mxu0 0.0
  %420 = vmatpush1.msra.mxu0 0.0
  %421 = vmatprep.subr.mxu0 0.0
  %422 = vmatpush1.msra.mxu0 0.0
  %423 = vmatprep.subr.mxu0 0.0
  %424 = vmatpush1.msra.mxu0 0.0
  %425 = vmatprep.subr.mxu0 0.0
  %426 = vmatpush1.msra.mxu0 0.0
  %427 = vmatprep.subr.mxu0 0.0
  %428 = vmatpush1.msra.mxu0 0.0
  %429 = vmatprep.mubr.f32.mxu0 0.0
  %430 = vmatmul.mubr.f32.gmra.mrb[0].mxu0 %v347
  %v431 = vpop.f32.mrb[0].mxu0
  %v432 = vadd.f32 0.0, %v431
  %v433 = vpop.f32.mrb[0].mxu0
  %v434 = vadd.f32 0.0, %v433
  %435 = vmatprep.mubr.f32.mxu0 0.0
  %436 = vmatmul.mubr.f32.gmra.mrb[0].mxu0 %v350
  %v437 = vpop.f32.mrb[0].mxu0
  %v438 = vadd.f32 0.0, %v437
  %v439 = vpop.f32.mrb[0].mxu0
  %v440 = vadd.f32 0.0, %v439
  %441 = vdwg.mxu0
  %442 = vmatprep.subr.mxu0 %v363
  %443 = vmatpush1.msra.mxu0 %v360
  %444 = vmatprep.subr.mxu0 0.0
  %445 = vmatpush1.msra.mxu0 0.0
  %446 = vmatprep.subr.mxu0 0.0
  %447 = vmatpush1.msra.mxu0 0.0
  %448 = vmatprep.subr.mxu0 0.0
  %449 = vmatpush1.msra.mxu0 0.0
  %450 = vmatprep.subr.mxu0 0.0
  %451 = vmatpush1.msra.mxu0 0.0
  %452 = vmatprep.subr.mxu0 0.0
  %453 = vmatpush1.msra.mxu0 0.0
  %454 = vmatprep.subr.mxu0 0.0
  %455 = vmatpush1.msra.mxu0 0.0
  %456 = vmatprep.subr.mxu0 0.0
  %457 = vmatpush1.msra.mxu0 0.0
  %458 = vmatprep.subr.mxu0 0.0
  %459 = vmatpush1.msra.mxu0 0.0
  %460 = vmatprep.subr.mxu0 0.0
  %461 = vmatpush1.msra.mxu0 0.0
  %462 = vmatprep.subr.mxu0 0.0
  %463 = vmatpush1.msra.mxu0 0.0
  %464 = vmatprep.subr.mxu0 0.0
  %465 = vmatpush1.msra.mxu0 0.0
  %466 = vmatprep.subr.mxu0 0.0
  %467 = vmatpush1.msra.mxu0 0.0
  %468 = vmatprep.subr.mxu0 0.0
  %469 = vmatpush1.msra.mxu0 0.0
  %470 = vmatprep.subr.mxu0 0.0
  %471 = vmatpush1.msra.mxu0 0.0
  %472 = vmatprep.subr.mxu0 0.0
  %473 = vmatpush1.msra.mxu0 0.0
  %474 = vmatprep.subr.mxu0 0.0
  %475 = vmatpush1.msra.mxu0 0.0
  %476 = vmatprep.subr.mxu0 0.0
  %477 = vmatpush1.msra.mxu0 0.0
  %478 = vmatprep.subr.mxu0 0.0
  %479 = vmatpush1.msra.mxu0 0.0
  %480 = vmatprep.subr.mxu0 0.0
  %481 = vmatpush1.msra.mxu0 0.0
  %482 = vmatprep.subr.mxu0 0.0
  %483 = vmatpush1.msra.mxu0 0.0
  %484 = vmatprep.subr.mxu0 0.0
  %485 = vmatpush1.msra.mxu0 0.0
  %486 = vmatprep.subr.mxu0 0.0
  %487 = vmatpush1.msra.mxu0 0.0
  %488 = vmatprep.subr.mxu0 0.0
  %489 = vmatpush1.msra.mxu0 0.0
  %490 = vmatprep.subr.mxu0 0.0
  %491 = vmatpush1.msra.mxu0 0.0
  %492 = vmatprep.subr.mxu0 0.0
  %493 = vmatpush1.msra.mxu0 0.0
  %494 = vmatprep.subr.mxu0 0.0
  %495 = vmatpush1.msra.mxu0 0.0
  %496 = vmatprep.subr.mxu0 0.0
  %497 = vmatpush1.msra.mxu0 0.0
  %498 = vmatprep.subr.mxu0 0.0
  %499 = vmatpush1.msra.mxu0 0.0
  %500 = vmatprep.subr.mxu0 0.0
  %501 = vmatpush1.msra.mxu0 0.0
  %502 = vmatprep.subr.mxu0 0.0
  %503 = vmatpush1.msra.mxu0 0.0
  %504 = vmatprep.subr.mxu0 0.0
  %505 = vmatpush1.msra.mxu0 0.0
  %506 = vmatprep.mubr.f32.mxu0 0.0
  %507 = vmatmul.mubr.f32.gmra.mrb[0].mxu0 %v347
  %v508 = vpop.f32.mrb[0].mxu0
  %v509 = vadd.f32 0.0, %v508
  %v510 = vpop.f32.mrb[0].mxu0
  %v511 = vadd.f32 0.0, %v510
  %512 = vmatprep.mubr.f32.mxu0 0.0
  %513 = vmatmul.mubr.f32.gmra.mrb[0].mxu0 %v350
  %v514 = vpop.f32.mrb[0].mxu0
  %v515 = vadd.f32 0.0, %v514
  %v516 = vpop.f32.mrb[0].mxu0
  %v517 = vadd.f32 0.0, %v516
  %518 = vdwg.mxu0
  %v520 = vsel %vm36, %v341, 0
  %v523 = vsel %vm36, %v342, 0
  %525 = vmatprep.subr.mxu0 %v43
  %526 = vmatpush1.msra.mxu0 %v41
  %527 = vmatprep.subr.mxu0 0.0
  %528 = vmatpush1.msra.mxu0 0.0
  %529 = vmatprep.subr.mxu0 0.0
  %530 = vmatpush1.msra.mxu0 0.0
  %531 = vmatprep.subr.mxu0 0.0
  %532 = vmatpush1.msra.mxu0 0.0
  %533 = vmatprep.subr.mxu0 0.0
  %534 = vmatpush1.msra.mxu0 0.0
  %535 = vmatprep.subr.mxu0 0.0
  %536 = vmatpush1.msra.mxu0 0.0
  %537 = vmatprep.subr.mxu0 0.0
  %538 = vmatpush1.msra.mxu0 0.0
  %539 = vmatprep.subr.mxu0 0.0
  %540 = vmatpush1.msra.mxu0 0.0
  %541 = vmatprep.subr.mxu0 0.0
  %542 = vmatpush1.msra.mxu0 0.0
  %543 = vmatprep.subr.mxu0 0.0
  %544 = vmatpush1.msra.mxu0 0.0
  %545 = vmatprep.subr.mxu0 0.0
  %546 = vmatpush1.msra.mxu0 0.0
  %547 = vmatprep.subr.mxu0 0.0
  %548 = vmatpush1.msra.mxu0 0.0
  %549 = vmatprep.subr.mxu0 0.0
  %550 = vmatpush1.msra.mxu0 0.0
  %551 = vmatprep.subr.mxu0 0.0
  %552 = vmatpush1.msra.mxu0 0.0
  %553 = vmatprep.subr.mxu0 0.0
  %554 = vmatpush1.msra.mxu0 0.0
  %555 = vmatprep.subr.mxu0 0.0
  %556 = vmatpush1.msra.mxu0 0.0
  %557 = vmatprep.subr.mxu0 0.0
  %558 = vmatpush1.msra.mxu0 0.0
  %559 = vmatprep.subr.mxu0 0.0
  %560 = vmatpush1.msra.mxu0 0.0
  %561 = vmatprep.subr.mxu0 0.0
  %562 = vmatpush1.msra.mxu0 0.0
  %563 = vmatprep.subr.mxu0 0.0
  %564 = vmatpush1.msra.mxu0 0.0
  %565 = vmatprep.subr.mxu0 0.0
  %566 = vmatpush1.msra.mxu0 0.0
  %567 = vmatprep.subr.mxu0 0.0
  %568 = vmatpush1.msra.mxu0 0.0
  %569 = vmatprep.subr.mxu0 0.0
  %570 = vmatpush1.msra.mxu0 0.0
  %571 = vmatprep.subr.mxu0 0.0
  %572 = vmatpush1.msra.mxu0 0.0
  %573 = vmatprep.subr.mxu0 0.0
  %574 = vmatpush1.msra.mxu0 0.0
  %575 = vmatprep.subr.mxu0 0.0
  %576 = vmatpush1.msra.mxu0 0.0
  %577 = vmatprep.subr.mxu0 0.0
  %578 = vmatpush1.msra.mxu0 0.0
  %579 = vmatprep.subr.mxu0 0.0
  %580 = vmatpush1.msra.mxu0 0.0
  %581 = vmatprep.subr.mxu0 0.0
  %582 = vmatpush1.msra.mxu0 0.0
  %583 = vmatprep.subr.mxu0 0.0
  %584 = vmatpush1.msra.mxu0 0.0
  %585 = vmatprep.subr.mxu0 0.0
  %586 = vmatpush1.msra.mxu0 0.0
  %587 = vmatprep.subr.mxu0 0.0
  %588 = vmatpush1.msra.mxu0 0.0
  %589 = vmatprep.mubr.f32.mxu0 0.0
  %590 = vmatmul.mubr.f32.gmra.mrb[0].mxu0 %v520
  %v591 = vpop.f32.mrb[0].mxu0
  %v592 = vadd.f32 %v432, %v591
  %v593 = vpop.f32.mrb[0].mxu0
  %v594 = vadd.f32 %v434, %v593
  %595 = vmatprep.mubr.f32.mxu0 0.0
  %596 = vmatmul.mubr.f32.gmra.mrb[0].mxu0 %v523
  %v597 = vpop.f32.mrb[0].mxu0
  %v598 = vadd.f32 %v438, %v597
  %v599 = vpop.f32.mrb[0].mxu0
  %v600 = vadd.f32 %v440, %v599
  %601 = vdwg.mxu0
  %602 = vmatprep.subr.mxu0 %v47
  %603 = vmatpush1.msra.mxu0 %v45
  %604 = vmatprep.subr.mxu0 0.0
  %605 = vmatpush1.msra.mxu0 0.0
  %606 = vmatprep.subr.mxu0 0.0
  %607 = vmatpush1.msra.mxu0 0.0
  %608 = vmatprep.subr.mxu0 0.0
  %609 = vmatpush1.msra.mxu0 0.0
  %610 = vmatprep.subr.mxu0 0.0
  %611 = vmatpush1.msra.mxu0 0.0
  %612 = vmatprep.subr.mxu0 0.0
  %613 = vmatpush1.msra.mxu0 0.0
  %614 = vmatprep.subr.mxu0 0.0
  %615 = vmatpush1.msra.mxu0 0.0
  %616 = vmatprep.subr.mxu0 0.0
  %617 = vmatpush1.msra.mxu0 0.0
  %618 = vmatprep.subr.mxu0 0.0
  %619 = vmatpush1.msra.mxu0 0.0
  %620 = vmatprep.subr.mxu0 0.0
  %621 = vmatpush1.msra.mxu0 0.0
  %622 = vmatprep.subr.mxu0 0.0
  %623 = vmatpush1.msra.mxu0 0.0
  %624 = vmatprep.subr.mxu0 0.0
  %625 = vmatpush1.msra.mxu0 0.0
  %626 = vmatprep.subr.mxu0 0.0
  %627 = vmatpush1.msra.mxu0 0.0
  %628 = vmatprep.subr.mxu0 0.0
  %629 = vmatpush1.msra.mxu0 0.0
  %630 = vmatprep.subr.mxu0 0.0
  %631 = vmatpush1.msra.mxu0 0.0
  %632 = vmatprep.subr.mxu0 0.0
  %633 = vmatpush1.msra.mxu0 0.0
  %634 = vmatprep.subr.mxu0 0.0
  %635 = vmatpush1.msra.mxu0 0.0
  %636 = vmatprep.subr.mxu0 0.0
  %637 = vmatpush1.msra.mxu0 0.0
  %638 = vmatprep.subr.mxu0 0.0
  %639 = vmatpush1.msra.mxu0 0.0
  %640 = vmatprep.subr.mxu0 0.0
  %641 = vmatpush1.msra.mxu0 0.0
  %642 = vmatprep.subr.mxu0 0.0
  %643 = vmatpush1.msra.mxu0 0.0
  %644 = vmatprep.subr.mxu0 0.0
  %645 = vmatpush1.msra.mxu0 0.0
  %646 = vmatprep.subr.mxu0 0.0
  %647 = vmatpush1.msra.mxu0 0.0
  %648 = vmatprep.subr.mxu0 0.0
  %649 = vmatpush1.msra.mxu0 0.0
  %650 = vmatprep.subr.mxu0 0.0
  %651 = vmatpush1.msra.mxu0 0.0
  %652 = vmatprep.subr.mxu0 0.0
  %653 = vmatpush1.msra.mxu0 0.0
  %654 = vmatprep.subr.mxu0 0.0
  %655 = vmatpush1.msra.mxu0 0.0
  %656 = vmatprep.subr.mxu0 0.0
  %657 = vmatpush1.msra.mxu0 0.0
  %658 = vmatprep.subr.mxu0 0.0
  %659 = vmatpush1.msra.mxu0 0.0
  %660 = vmatprep.subr.mxu0 0.0
  %661 = vmatpush1.msra.mxu0 0.0
  %662 = vmatprep.subr.mxu0 0.0
  %663 = vmatpush1.msra.mxu0 0.0
  %664 = vmatprep.subr.mxu0 0.0
  %665 = vmatpush1.msra.mxu0 0.0
  %666 = vmatprep.mubr.f32.mxu0 0.0
  %667 = vmatmul.mubr.f32.gmra.mrb[0].mxu0 %v520
  %v668 = vpop.f32.mrb[0].mxu0
  %v669 = vadd.f32 %v509, %v668
  %v670 = vpop.f32.mrb[0].mxu0
  %v671 = vadd.f32 %v511, %v670
  %672 = vmatprep.mubr.f32.mxu0 0.0
  %673 = vmatmul.mubr.f32.gmra.mrb[0].mxu0 %v523
  %v674 = vpop.f32.mrb[0].mxu0
  %v675 = vadd.f32 %v515, %v674
  %v676 = vpop.f32.mrb[0].mxu0
  %v677 = vadd.f32 %v517, %v676
  %678 = vdwg.mxu0
  %v679 = vand.u32 2147483647, %v592
  %vm680 = vcmp.le.f32.partialorder %v679, 0.7853982
  %vm681 = vcmp.lt.s32.totalorder %v592, 0
  %v682 = vand.u32 %v592, 2139095040
  %v683 = vshrl.u32 %v682, 23
  %v684 = vsub.s32 %v683, 127
  %v685 = vand.u32 2147483647, %v592
  %v686 = vand.u32 %v685, 8388607
  %v687 = vor.u32 %v686, 8388608
  %v688 = vsub.s32 0, %v687
  %v689 = vadd.s32 %v684, 1
  %vm690 = vcmp.gt.s32.totalorder %v689, 0
  %v691 = vsel %vm690, %v689, 0
  %v692 = vshrl.u32 %v691, 5
  %v693 = vand.u32 %v691, 31
  %v694 = vsub.s32 32, %v693
  %v695 = vshrl.u32 683565275, %v694
  %v696 = vshll.u32 683565275, %v693
  %v697 = vshrl.u32 2475754826, %v694
  %v698 = vor.u32 %v696, %v697
  %v699 = vshll.u32 2475754826, %v693
  %v700 = vshrl.u32 2131351028, %v694
  %v701 = vor.u32 %v699, %v700
  %v702 = vshll.u32 2131351028, %v693
  %v703 = vshrl.u32 2102212464, %v694
  %v704 = vor.u32 %v702, %v703
  %v705 = vshll.u32 2102212464, %v693
  %v706 = vshrl.u32 920167782, %v694
  %v707 = vor.u32 %v705, %v706
  %v708 = vshll.u32 920167782, %v693
  %v709 = vshrl.u32 1326507024, %v694
  %v710 = vor.u32 %v708, %v709
  %vm711 = vcmp.lt.s32.totalorder %v692, 1
  %vm712 = vcmp.lt.s32.totalorder %v692, 2
  %vm713 = vcmp.lt.s32.totalorder %v692, 3
  %vm714 = vcmp.lt.s32.totalorder %v692, 4
  %v715 = vsel %vm711, %v695, %v698
  %v716 = vsel %vm714, %v704, 2102212464
  %v717 = vsel %vm713, %v701, %v716
  %v718 = vsel %vm712, %v715, %v717
  %v719 = vsel %vm711, %v698, %v701
  %v720 = vsel %vm714, %v707, 920167782
  %v721 = vsel %vm713, %v704, %v720
  %v722 = vsel %vm712, %v719, %v721
  %v723 = vsel %vm711, %v701, %v704
  %v724 = vsel %vm714, %v710, 1326507024
  %v725 = vsel %vm713, %v707, %v724
  %v726 = vsel %vm712, %v723, %v725
  %v727 = vshll.u32 %v687, 8
  %v728 = vmul.u32.u64.compose %v727, %v726
  %v729 = vextract.low.u32 %v728
  %v730 = vextract.high.u32 %v728
  %v731 = vmul.u32.u64.compose %v727, %v722
  %v732 = vextract.low.u32 %v731
  %v733 = vextract.high.u32 %v731
  %v734 = vmul.u32 %v727, %v718
  %v735 = vadd.s32 %v730, %v732
  %vm736 = vc.u32 %v730, %v732
  %v737 = vadd.s32 %v733, 1
  %v738 = vsel %vm736, %v737, %v733
  %v739 = vadd.s32 %v734, %v738
  %v740 = vadd.s32 %v739, 536870912
  %v741 = vshrl.u32 %v740, 30
  %v742 = vshll.u32 %v741, 30
  %v743 = vsub.s32 %v739, %v742
  %vm744 = vcmp.lt.s32.totalorder %v743, 0
  %v745 = vsub.s32 0, %v743
  %v746 = vsel %vm744, %v745, %v743
  %v747 = vclz %v746
  %v748 = vsub.s32 %v747, 2
  %vm749 = vcmp.gt.s32.totalorder 0, %v748
  %v750 = vsel %vm749, 0, %v748
  %v751 = vsub.s32 32, %v750
  %v752 = vshll.u32 %v743, %v750
  %v753 = vshrl.u32 %v735, %v751
  %v754 = vor.u32 %v752, %v753
  %v755 = vsub.s32 4294967266, %v750
  %v756 = vadd.s32 %v755, 127
  %v757 = vshll.u32 %v756, 23
  %v758 = vor.u32 4788187, %v757
  %v759 = vand.u32 2147483647, %v758
  %v761 = vcvt.s32.f32 %v754
  %v762 = vmul.f32 %v761, %v759
  %v763 = vxor.u32 %v762, 2147483648
  %v764 = vsel %vm681, %v763, %v762
  %v765 = vsub.s32 4, %v741
  %v766 = vsel %vm681, %v765, %v741
  %v767 = vsel %vm680, %v592, %v764
  %v768 = vsel %vm680, 0, %v766
  %v769 = vcosq.f32.pop %v767
  %v770 = vsinq.f32.pop %v767
  %vm771 = vweird.f32 %v592
  %v772 = vand.u32 %v768, 3
  %vm773 = vcmp.lt.s32.totalorder %v772, 2
  %vm774 = vcmp.eq.s32.totalorder %v772, 0
  %v775 = vxor.u32 %v770, 2147483648
  %v776 = vsel %vm774, %v769, %v775
  %vm777 = vcmp.eq.s32.totalorder %v772, 2
  %v778 = vxor.u32 %v769, 2147483648
  %v779 = vsel %vm777, %v778, %v770
  %v780 = vsel %vm773, %v776, %v779
  %v781 = vsel %vm771, nan, %v780
  %v782 = vand.u32 2147483647, %v594
  %vm783 = vcmp.le.f32.partialorder %v782, 0.7853982
  %vm784 = vcmp.lt.s32.totalorder %v594, 0
  %v785 = vand.u32 %v594, 2139095040
  %v786 = vshrl.u32 %v785, 23
  %v787 = vsub.s32 %v786, 127
  %v788 = vand.u32 2147483647, %v594
  %v789 = vand.u32 %v788, 8388607
  %v790 = vor.u32 %v789, 8388608
  %v791 = vsub.s32 0, %v790
  %v792 = vadd.s32 %v787, 1
  %vm793 = vcmp.gt.s32.totalorder %v792, 0
  %v794 = vsel %vm793, %v792, 0
  %v795 = vshrl.u32 %v794, 5
  %v796 = vand.u32 %v794, 31
  %v797 = vsub.s32 32, %v796
  %v798 = vshrl.u32 683565275, %v797
  %v799 = vshll.u32 683565275, %v796
  %v800 = vshrl.u32 2475754826, %v797
  %v801 = vor.u32 %v799, %v800
  %v802 = vshll.u32 2475754826, %v796
  %v803 = vshrl.u32 2131351028, %v797
  %v804 = vor.u32 %v802, %v803
  %v805 = vshll.u32 2131351028, %v796
  %v806 = vshrl.u32 2102212464, %v797
  %v807 = vor.u32 %v805, %v806
  %v808 = vshll.u32 2102212464, %v796
  %v809 = vshrl.u32 920167782, %v797
  %v810 = vor.u32 %v808, %v809
  %v811 = vshll.u32 920167782, %v796
  %v812 = vshrl.u32 1326507024, %v797
  %v813 = vor.u32 %v811, %v812
  %vm814 = vcmp.lt.s32.totalorder %v795, 1
  %vm815 = vcmp.lt.s32.totalorder %v795, 2
  %vm816 = vcmp.lt.s32.totalorder %v795, 3
  %vm817 = vcmp.lt.s32.totalorder %v795, 4
  %v818 = vsel %vm814, %v798, %v801
  %v819 = vsel %vm817, %v807, 2102212464
  %v820 = vsel %vm816, %v804, %v819
  %v821 = vsel %vm815, %v818, %v820
  %v822 = vsel %vm814, %v801, %v804
  %v823 = vsel %vm817, %v810, 920167782
  %v824 = vsel %vm816, %v807, %v823
  %v825 = vsel %vm815, %v822, %v824
  %v826 = vsel %vm814, %v804, %v807
  %v827 = vsel %vm817, %v813, 1326507024
  %v828 = vsel %vm816, %v810, %v827
  %v829 = vsel %vm815, %v826, %v828
  %v830 = vshll.u32 %v790, 8
  %v831 = vmul.u32.u64.compose %v830, %v829
  %v832 = vextract.low.u32 %v831
  %v833 = vextract.high.u32 %v831
  %v834 = vmul.u32.u64.compose %v830, %v825
  %v835 = vextract.low.u32 %v834
  %v836 = vextract.high.u32 %v834
  %v837 = vmul.u32 %v830, %v821
  %v838 = vadd.s32 %v833, %v835
  %vm839 = vc.u32 %v833, %v835
  %v840 = vadd.s32 %v836, 1
  %v841 = vsel %vm839, %v840, %v836
  %v842 = vadd.s32 %v837, %v841
  %v843 = vadd.s32 %v842, 536870912
  %v844 = vshrl.u32 %v843, 30
  %v845 = vshll.u32 %v844, 30
  %v846 = vsub.s32 %v842, %v845
  %vm847 = vcmp.lt.s32.totalorder %v846, 0
  %v848 = vsub.s32 0, %v846
  %v849 = vsel %vm847, %v848, %v846
  %v850 = vclz %v849
  %v851 = vsub.s32 %v850, 2
  %vm852 = vcmp.gt.s32.totalorder 0, %v851
  %v853 = vsel %vm852, 0, %v851
  %v854 = vsub.s32 32, %v853
  %v855 = vshll.u32 %v846, %v853
  %v856 = vshrl.u32 %v838, %v854
  %v857 = vor.u32 %v855, %v856
  %v858 = vsub.s32 4294967266, %v853
  %v859 = vadd.s32 %v858, 127
  %v860 = vshll.u32 %v859, 23
  %v861 = vor.u32 4788187, %v860
  %v862 = vand.u32 2147483647, %v861
  %v864 = vcvt.s32.f32 %v857
  %v865 = vmul.f32 %v864, %v862
  %v866 = vxor.u32 %v865, 2147483648
  %v867 = vsel %vm784, %v866, %v865
  %v868 = vsub.s32 4, %v844
  %v869 = vsel %vm784, %v868, %v844
  %v870 = vsel %vm783, %v594, %v867
  %v871 = vsel %vm783, 0, %v869
  %v872 = vcosq.f32.pop %v870
  %v873 = vsinq.f32.pop %v870
  %vm874 = vweird.f32 %v594
  %v875 = vand.u32 %v871, 3
  %vm876 = vcmp.lt.s32.totalorder %v875, 2
  %vm877 = vcmp.eq.s32.totalorder %v875, 0
  %v878 = vxor.u32 %v873, 2147483648
  %v879 = vsel %vm877, %v872, %v878
  %vm880 = vcmp.eq.s32.totalorder %v875, 2
  %v881 = vxor.u32 %v872, 2147483648
  %v882 = vsel %vm880, %v881, %v873
  %v883 = vsel %vm876, %v879, %v882
  %v884 = vsel %vm874, nan, %v883
  %v885 = vand.u32 2147483647, %v669
  %vm886 = vcmp.le.f32.partialorder %v885, 0.7853982
  %vm887 = vcmp.lt.s32.totalorder %v669, 0
  %v888 = vand.u32 %v669, 2139095040
  %v889 = vshrl.u32 %v888, 23
  %v890 = vsub.s32 %v889, 127
  %v891 = vand.u32 2147483647, %v669
  %v892 = vand.u32 %v891, 8388607
  %v893 = vor.u32 %v892, 8388608
  %v894 = vsub.s32 0, %v893
  %v895 = vadd.s32 %v890, 1
  %vm896 = vcmp.gt.s32.totalorder %v895, 0
  %v897 = vsel %vm896, %v895, 0
  %v898 = vshrl.u32 %v897, 5
  %v899 = vand.u32 %v897, 31
  %v900 = vsub.s32 32, %v899
  %v901 = vshrl.u32 683565275, %v900
  %v902 = vshll.u32 683565275, %v899
  %v903 = vshrl.u32 2475754826, %v900
  %v904 = vor.u32 %v902, %v903
  %v905 = vshll.u32 2475754826, %v899
  %v906 = vshrl.u32 2131351028, %v900
  %v907 = vor.u32 %v905, %v906
  %v908 = vshll.u32 2131351028, %v899
  %v909 = vshrl.u32 2102212464, %v900
  %v910 = vor.u32 %v908, %v909
  %v911 = vshll.u32 2102212464, %v899
  %v912 = vshrl.u32 920167782, %v900
  %v913 = vor.u32 %v911, %v912
  %v914 = vshll.u32 920167782, %v899
  %v915 = vshrl.u32 1326507024, %v900
  %v916 = vor.u32 %v914, %v915
  %vm917 = vcmp.lt.s32.totalorder %v898, 1
  %vm918 = vcmp.lt.s32.totalorder %v898, 2
  %vm919 = vcmp.lt.s32.totalorder %v898, 3
  %vm920 = vcmp.lt.s32.totalorder %v898, 4
  %v921 = vsel %vm917, %v901, %v904
  %v922 = vsel %vm920, %v910, 2102212464
  %v923 = vsel %vm919, %v907, %v922
  %v924 = vsel %vm918, %v921, %v923
  %v925 = vsel %vm917, %v904, %v907
  %v926 = vsel %vm920, %v913, 920167782
  %v927 = vsel %vm919, %v910, %v926
  %v928 = vsel %vm918, %v925, %v927
  %v929 = vsel %vm917, %v907, %v910
  %v930 = vsel %vm920, %v916, 1326507024
  %v931 = vsel %vm919, %v913, %v930
  %v932 = vsel %vm918, %v929, %v931
  %v933 = vshll.u32 %v893, 8
  %v934 = vmul.u32.u64.compose %v933, %v932
  %v935 = vextract.low.u32 %v934
  %v936 = vextract.high.u32 %v934
  %v937 = vmul.u32.u64.compose %v933, %v928
  %v938 = vextract.low.u32 %v937
  %v939 = vextract.high.u32 %v937
  %v940 = vmul.u32 %v933, %v924
  %v941 = vadd.s32 %v936, %v938
  %vm942 = vc.u32 %v936, %v938
  %v943 = vadd.s32 %v939, 1
  %v944 = vsel %vm942, %v943, %v939
  %v945 = vadd.s32 %v940, %v944
  %v946 = vadd.s32 %v945, 536870912
  %v947 = vshrl.u32 %v946, 30
  %v948 = vshll.u32 %v947, 30
  %v949 = vsub.s32 %v945, %v948
  %vm950 = vcmp.lt.s32.totalorder %v949, 0
  %v951 = vsub.s32 0, %v949
  %v952 = vsel %vm950, %v951, %v949
  %v953 = vclz %v952
  %v954 = vsub.s32 %v953, 2
  %vm955 = vcmp.gt.s32.totalorder 0, %v954
  %v956 = vsel %vm955, 0, %v954
  %v957 = vsub.s32 32, %v956
  %v958 = vshll.u32 %v949, %v956
  %v959 = vshrl.u32 %v941, %v957
  %v960 = vor.u32 %v958, %v959
  %v961 = vsub.s32 4294967266, %v956
  %v962 = vadd.s32 %v961, 127
  %v963 = vshll.u32 %v962, 23
  %v964 = vor.u32 4788187, %v963
  %v965 = vand.u32 2147483647, %v964
  %v967 = vcvt.s32.f32 %v960
  %v968 = vmul.f32 %v967, %v965
  %v969 = vxor.u32 %v968, 2147483648
  %v970 = vsel %vm887, %v969, %v968
  %v971 = vsub.s32 4, %v947
  %v972 = vsel %vm887, %v971, %v947
  %v973 = vsel %vm886, %v669, %v970
  %v974 = vsel %vm886, 0, %v972
  %v975 = vcosq.f32.pop %v973
  %v976 = vsinq.f32.pop %v973
  %vm977 = vweird.f32 %v669
  %v978 = vand.u32 %v974, 3
  %vm979 = vcmp.lt.s32.totalorder %v978, 2
  %vm980 = vcmp.eq.s32.totalorder %v978, 0
  %v981 = vxor.u32 %v976, 2147483648
  %v982 = vsel %vm980, %v975, %v981
  %vm983 = vcmp.eq.s32.totalorder %v978, 2
  %v984 = vxor.u32 %v975, 2147483648
  %v985 = vsel %vm983, %v984, %v976
  %v986 = vsel %vm979, %v982, %v985
  %v987 = vsel %vm977, nan, %v986
  %v988 = vand.u32 2147483647, %v671
  %vm989 = vcmp.le.f32.partialorder %v988, 0.7853982
  %vm990 = vcmp.lt.s32.totalorder %v671, 0
  %v991 = vand.u32 %v671, 2139095040
  %v992 = vshrl.u32 %v991, 23
  %v993 = vsub.s32 %v992, 127
  %v994 = vand.u32 2147483647, %v671
  %v995 = vand.u32 %v994, 8388607
  %v996 = vor.u32 %v995, 8388608
  %v997 = vsub.s32 0, %v996
  %v998 = vadd.s32 %v993, 1
  %vm999 = vcmp.gt.s32.totalorder %v998, 0
  %v1000 = vsel %vm999, %v998, 0
  %v1001 = vshrl.u32 %v1000, 5
  %v1002 = vand.u32 %v1000, 31
  %v1003 = vsub.s32 32, %v1002
  %v1004 = vshrl.u32 683565275, %v1003
  %v1005 = vshll.u32 683565275, %v1002
  %v1006 = vshrl.u32 2475754826, %v1003
  %v1007 = vor.u32 %v1005, %v1006
  %v1008 = vshll.u32 2475754826, %v1002
  %v1009 = vshrl.u32 2131351028, %v1003
  %v1010 = vor.u32 %v1008, %v1009
  %v1011 = vshll.u32 2131351028, %v1002
  %v1012 = vshrl.u32 2102212464, %v1003
  %v1013 = vor.u32 %v1011, %v1012
  %v1014 = vshll.u32 2102212464, %v1002
  %v1015 = vshrl.u32 920167782, %v1003
  %v1016 = vor.u32 %v1014, %v1015
  %v1017 = vshll.u32 920167782, %v1002
  %v1018 = vshrl.u32 1326507024, %v1003
  %v1019 = vor.u32 %v1017, %v1018
  %vm1020 = vcmp.lt.s32.totalorder %v1001, 1
  %vm1021 = vcmp.lt.s32.totalorder %v1001, 2
  %vm1022 = vcmp.lt.s32.totalorder %v1001, 3
  %vm1023 = vcmp.lt.s32.totalorder %v1001, 4
  %v1024 = vsel %vm1020, %v1004, %v1007
  %v1025 = vsel %vm1023, %v1013, 2102212464
  %v1026 = vsel %vm1022, %v1010, %v1025
  %v1027 = vsel %vm1021, %v1024, %v1026
  %v1028 = vsel %vm1020, %v1007, %v1010
  %v1029 = vsel %vm1023, %v1016, 920167782
  %v1030 = vsel %vm1022, %v1013, %v1029
  %v1031 = vsel %vm1021, %v1028, %v1030
  %v1032 = vsel %vm1020, %v1010, %v1013
  %v1033 = vsel %vm1023, %v1019, 1326507024
  %v1034 = vsel %vm1022, %v1016, %v1033
  %v1035 = vsel %vm1021, %v1032, %v1034
  %v1036 = vshll.u32 %v996, 8
  %v1037 = vmul.u32.u64.compose %v1036, %v1035
  %v1038 = vextract.low.u32 %v1037
  %v1039 = vextract.high.u32 %v1037
  %v1040 = vmul.u32.u64.compose %v1036, %v1031
  %v1041 = vextract.low.u32 %v1040
  %v1042 = vextract.high.u32 %v1040
  %v1043 = vmul.u32 %v1036, %v1027
  %v1044 = vadd.s32 %v1039, %v1041
  %vm1045 = vc.u32 %v1039, %v1041
  %v1046 = vadd.s32 %v1042, 1
  %v1047 = vsel %vm1045, %v1046, %v1042
  %v1048 = vadd.s32 %v1043, %v1047
  %v1049 = vadd.s32 %v1048, 536870912
  %v1050 = vshrl.u32 %v1049, 30
  %v1051 = vshll.u32 %v1050, 30
  %v1052 = vsub.s32 %v1048, %v1051
  %vm1053 = vcmp.lt.s32.totalorder %v1052, 0
  %v1054 = vsub.s32 0, %v1052
  %v1055 = vsel %vm1053, %v1054, %v1052
  %v1056 = vclz %v1055
  %v1057 = vsub.s32 %v1056, 2
  %vm1058 = vcmp.gt.s32.totalorder 0, %v1057
  %v1059 = vsel %vm1058, 0, %v1057
  %v1060 = vsub.s32 32, %v1059
  %v1061 = vshll.u32 %v1052, %v1059
  %v1062 = vshrl.u32 %v1044, %v1060
  %v1063 = vor.u32 %v1061, %v1062
  %v1064 = vsub.s32 4294967266, %v1059
  %v1065 = vadd.s32 %v1064, 127
  %v1066 = vshll.u32 %v1065, 23
  %v1067 = vor.u32 4788187, %v1066
  %v1068 = vand.u32 2147483647, %v1067
  %v1070 = vcvt.s32.f32 %v1063
  %v1071 = vmul.f32 %v1070, %v1068
  %v1072 = vxor.u32 %v1071, 2147483648
  %v1073 = vsel %vm990, %v1072, %v1071
  %v1074 = vsub.s32 4, %v1050
  %v1075 = vsel %vm990, %v1074, %v1050
  %v1076 = vsel %vm989, %v671, %v1073
  %v1077 = vsel %vm989, 0, %v1075
  %v1078 = vcosq.f32.pop %v1076
  %v1079 = vsinq.f32.pop %v1076
  %vm1080 = vweird.f32 %v671
  %v1081 = vand.u32 %v1077, 3
  %vm1082 = vcmp.lt.s32.totalorder %v1081, 2
  %vm1083 = vcmp.eq.s32.totalorder %v1081, 0
  %v1084 = vxor.u32 %v1079, 2147483648
  %v1085 = vsel %vm1083, %v1078, %v1084
  %vm1086 = vcmp.eq.s32.totalorder %v1081, 2
  %v1087 = vxor.u32 %v1078, 2147483648
  %v1088 = vsel %vm1086, %v1087, %v1079
  %v1089 = vsel %vm1082, %v1085, %v1088
  %v1090 = vsel %vm1080, nan, %v1089
  %v1091 = vand.u32 2147483647, %v598
  %vm1092 = vcmp.le.f32.partialorder %v1091, 0.7853982
  %vm1093 = vcmp.lt.s32.totalorder %v598, 0
  %v1094 = vand.u32 %v598, 2139095040
  %v1095 = vshrl.u32 %v1094, 23
  %v1096 = vsub.s32 %v1095, 127
  %v1097 = vand.u32 2147483647, %v598
  %v1098 = vand.u32 %v1097, 8388607
  %v1099 = vor.u32 %v1098, 8388608
  %v1100 = vsub.s32 0, %v1099
  %v1101 = vadd.s32 %v1096, 1
  %vm1102 = vcmp.gt.s32.totalorder %v1101, 0
  %v1103 = vsel %vm1102, %v1101, 0
  %v1104 = vshrl.u32 %v1103, 5
  %v1105 = vand.u32 %v1103, 31
  %v1106 = vsub.s32 32, %v1105
  %v1107 = vshrl.u32 683565275, %v1106
  %v1108 = vshll.u32 683565275, %v1105
  %v1109 = vshrl.u32 2475754826, %v1106
  %v1110 = vor.u32 %v1108, %v1109
  %v1111 = vshll.u32 2475754826, %v1105
  %v1112 = vshrl.u32 2131351028, %v1106
  %v1113 = vor.u32 %v1111, %v1112
  %v1114 = vshll.u32 2131351028, %v1105
  %v1115 = vshrl.u32 2102212464, %v1106
  %v1116 = vor.u32 %v1114, %v1115
  %v1117 = vshll.u32 2102212464, %v1105
  %v1118 = vshrl.u32 920167782, %v1106
  %v1119 = vor.u32 %v1117, %v1118
  %v1120 = vshll.u32 920167782, %v1105
  %v1121 = vshrl.u32 1326507024, %v1106
  %v1122 = vor.u32 %v1120, %v1121
  %vm1123 = vcmp.lt.s32.totalorder %v1104, 1
  %vm1124 = vcmp.lt.s32.totalorder %v1104, 2
  %vm1125 = vcmp.lt.s32.totalorder %v1104, 3
  %vm1126 = vcmp.lt.s32.totalorder %v1104, 4
  %v1127 = vsel %vm1123, %v1107, %v1110
  %v1128 = vsel %vm1126, %v1116, 2102212464
  %v1129 = vsel %vm1125, %v1113, %v1128
  %v1130 = vsel %vm1124, %v1127, %v1129
  %v1131 = vsel %vm1123, %v1110, %v1113
  %v1132 = vsel %vm1126, %v1119, 920167782
  %v1133 = vsel %vm1125, %v1116, %v1132
  %v1134 = vsel %vm1124, %v1131, %v1133
  %v1135 = vsel %vm1123, %v1113, %v1116
  %v1136 = vsel %vm1126, %v1122, 1326507024
  %v1137 = vsel %vm1125, %v1119, %v1136
  %v1138 = vsel %vm1124, %v1135, %v1137
  %v1139 = vshll.u32 %v1099, 8
  %v1140 = vmul.u32.u64.compose %v1139, %v1138
  %v1141 = vextract.low.u32 %v1140
  %v1142 = vextract.high.u32 %v1140
  %v1143 = vmul.u32.u64.compose %v1139, %v1134
  %v1144 = vextract.low.u32 %v1143
  %v1145 = vextract.high.u32 %v1143
  %v1146 = vmul.u32 %v1139, %v1130
  %v1147 = vadd.s32 %v1142, %v1144
  %vm1148 = vc.u32 %v1142, %v1144
  %v1149 = vadd.s32 %v1145, 1
  %v1150 = vsel %vm1148, %v1149, %v1145
  %v1151 = vadd.s32 %v1146, %v1150
  %v1152 = vadd.s32 %v1151, 536870912
  %v1153 = vshrl.u32 %v1152, 30
  %v1154 = vshll.u32 %v1153, 30
  %v1155 = vsub.s32 %v1151, %v1154
  %vm1156 = vcmp.lt.s32.totalorder %v1155, 0
  %v1157 = vsub.s32 0, %v1155
  %v1158 = vsel %vm1156, %v1157, %v1155
  %v1159 = vclz %v1158
  %v1160 = vsub.s32 %v1159, 2
  %vm1161 = vcmp.gt.s32.totalorder 0, %v1160
  %v1162 = vsel %vm1161, 0, %v1160
  %v1163 = vsub.s32 32, %v1162
  %v1164 = vshll.u32 %v1155, %v1162
  %v1165 = vshrl.u32 %v1147, %v1163
  %v1166 = vor.u32 %v1164, %v1165
  %v1167 = vsub.s32 4294967266, %v1162
  %v1168 = vadd.s32 %v1167, 127
  %v1169 = vshll.u32 %v1168, 23
  %v1170 = vor.u32 4788187, %v1169
  %v1171 = vand.u32 2147483647, %v1170
  %v1173 = vcvt.s32.f32 %v1166
  %v1174 = vmul.f32 %v1173, %v1171
  %v1175 = vxor.u32 %v1174, 2147483648
  %v1176 = vsel %vm1093, %v1175, %v1174
  %v1177 = vsub.s32 4, %v1153
  %v1178 = vsel %vm1093, %v1177, %v1153
  %v1179 = vsel %vm1092, %v598, %v1176
  %v1180 = vsel %vm1092, 0, %v1178
  %v1181 = vcosq.f32.pop %v1179
  %v1182 = vsinq.f32.pop %v1179
  %vm1183 = vweird.f32 %v598
  %v1184 = vand.u32 %v1180, 3
  %vm1185 = vcmp.lt.s32.totalorder %v1184, 2
  %vm1186 = vcmp.eq.s32.totalorder %v1184, 0
  %v1187 = vxor.u32 %v1182, 2147483648
  %v1188 = vsel %vm1186, %v1181, %v1187
  %vm1189 = vcmp.eq.s32.totalorder %v1184, 2
  %v1190 = vxor.u32 %v1181, 2147483648
  %v1191 = vsel %vm1189, %v1190, %v1182
  %v1192 = vsel %vm1185, %v1188, %v1191
  %v1193 = vsel %vm1183, nan, %v1192
  %v1194 = vand.u32 2147483647, %v600
  %vm1195 = vcmp.le.f32.partialorder %v1194, 0.7853982
  %vm1196 = vcmp.lt.s32.totalorder %v600, 0
  %v1197 = vand.u32 %v600, 2139095040
  %v1198 = vshrl.u32 %v1197, 23
  %v1199 = vsub.s32 %v1198, 127
  %v1200 = vand.u32 2147483647, %v600
  %v1201 = vand.u32 %v1200, 8388607
  %v1202 = vor.u32 %v1201, 8388608
  %v1203 = vsub.s32 0, %v1202
  %v1204 = vadd.s32 %v1199, 1
  %vm1205 = vcmp.gt.s32.totalorder %v1204, 0
  %v1206 = vsel %vm1205, %v1204, 0
  %v1207 = vshrl.u32 %v1206, 5
  %v1208 = vand.u32 %v1206, 31
  %v1209 = vsub.s32 32, %v1208
  %v1210 = vshrl.u32 683565275, %v1209
  %v1211 = vshll.u32 683565275, %v1208
  %v1212 = vshrl.u32 2475754826, %v1209
  %v1213 = vor.u32 %v1211, %v1212
  %v1214 = vshll.u32 2475754826, %v1208
  %v1215 = vshrl.u32 2131351028, %v1209
  %v1216 = vor.u32 %v1214, %v1215
  %v1217 = vshll.u32 2131351028, %v1208
  %v1218 = vshrl.u32 2102212464, %v1209
  %v1219 = vor.u32 %v1217, %v1218
  %v1220 = vshll.u32 2102212464, %v1208
  %v1221 = vshrl.u32 920167782, %v1209
  %v1222 = vor.u32 %v1220, %v1221
  %v1223 = vshll.u32 920167782, %v1208
  %v1224 = vshrl.u32 1326507024, %v1209
  %v1225 = vor.u32 %v1223, %v1224
  %vm1226 = vcmp.lt.s32.totalorder %v1207, 1
  %vm1227 = vcmp.lt.s32.totalorder %v1207, 2
  %vm1228 = vcmp.lt.s32.totalorder %v1207, 3
  %vm1229 = vcmp.lt.s32.totalorder %v1207, 4
  %v1230 = vsel %vm1226, %v1210, %v1213
  %v1231 = vsel %vm1229, %v1219, 2102212464
  %v1232 = vsel %vm1228, %v1216, %v1231
  %v1233 = vsel %vm1227, %v1230, %v1232
  %v1234 = vsel %vm1226, %v1213, %v1216
  %v1235 = vsel %vm1229, %v1222, 920167782
  %v1236 = vsel %vm1228, %v1219, %v1235
  %v1237 = vsel %vm1227, %v1234, %v1236
  %v1238 = vsel %vm1226, %v1216, %v1219
  %v1239 = vsel %vm1229, %v1225, 1326507024
  %v1240 = vsel %vm1228, %v1222, %v1239
  %v1241 = vsel %vm1227, %v1238, %v1240
  %v1242 = vshll.u32 %v1202, 8
  %v1243 = vmul.u32.u64.compose %v1242, %v1241
  %v1244 = vextract.low.u32 %v1243
  %v1245 = vextract.high.u32 %v1243
  %v1246 = vmul.u32.u64.compose %v1242, %v1237
  %v1247 = vextract.low.u32 %v1246
  %v1248 = vextract.high.u32 %v1246
  %v1249 = vmul.u32 %v1242, %v1233
  %v1250 = vadd.s32 %v1245, %v1247
  %vm1251 = vc.u32 %v1245, %v1247
  %v1252 = vadd.s32 %v1248, 1
  %v1253 = vsel %vm1251, %v1252, %v1248
  %v1254 = vadd.s32 %v1249, %v1253
  %v1255 = vadd.s32 %v1254, 536870912
  %v1256 = vshrl.u32 %v1255, 30
  %v1257 = vshll.u32 %v1256, 30
  %v1258 = vsub.s32 %v1254, %v1257
  %vm1259 = vcmp.lt.s32.totalorder %v1258, 0
  %v1260 = vsub.s32 0, %v1258
  %v1261 = vsel %vm1259, %v1260, %v1258
  %v1262 = vclz %v1261
  %v1263 = vsub.s32 %v1262, 2
  %vm1264 = vcmp.gt.s32.totalorder 0, %v1263
  %v1265 = vsel %vm1264, 0, %v1263
  %v1266 = vsub.s32 32, %v1265
  %v1267 = vshll.u32 %v1258, %v1265
  %v1268 = vshrl.u32 %v1250, %v1266
  %v1269 = vor.u32 %v1267, %v1268
  %v1270 = vsub.s32 4294967266, %v1265
  %v1271 = vadd.s32 %v1270, 127
  %v1272 = vshll.u32 %v1271, 23
  %v1273 = vor.u32 4788187, %v1272
  %v1274 = vand.u32 2147483647, %v1273
  %v1276 = vcvt.s32.f32 %v1269
  %v1277 = vmul.f32 %v1276, %v1274
  %v1278 = vxor.u32 %v1277, 2147483648
  %v1279 = vsel %vm1196, %v1278, %v1277
  %v1280 = vsub.s32 4, %v1256
  %v1281 = vsel %vm1196, %v1280, %v1256
  %v1282 = vsel %vm1195, %v600, %v1279
  %v1283 = vsel %vm1195, 0, %v1281
  %v1284 = vcosq.f32.pop %v1282
  %v1285 = vsinq.f32.pop %v1282
  %vm1286 = vweird.f32 %v600
  %v1287 = vand.u32 %v1283, 3
  %vm1288 = vcmp.lt.s32.totalorder %v1287, 2
  %vm1289 = vcmp.eq.s32.totalorder %v1287, 0
  %v1290 = vxor.u32 %v1285, 2147483648
  %v1291 = vsel %vm1289, %v1284, %v1290
  %vm1292 = vcmp.eq.s32.totalorder %v1287, 2
  %v1293 = vxor.u32 %v1284, 2147483648
  %v1294 = vsel %vm1292, %v1293, %v1285
  %v1295 = vsel %vm1288, %v1291, %v1294
  %v1296 = vsel %vm1286, nan, %v1295
  %v1297 = vand.u32 2147483647, %v675
  %vm1298 = vcmp.le.f32.partialorder %v1297, 0.7853982
  %vm1299 = vcmp.lt.s32.totalorder %v675, 0
  %v1300 = vand.u32 %v675, 2139095040
  %v1301 = vshrl.u32 %v1300, 23
  %v1302 = vsub.s32 %v1301, 127
  %v1303 = vand.u32 2147483647, %v675
  %v1304 = vand.u32 %v1303, 8388607
  %v1305 = vor.u32 %v1304, 8388608
  %v1306 = vsub.s32 0, %v1305
  %v1307 = vadd.s32 %v1302, 1
  %vm1308 = vcmp.gt.s32.totalorder %v1307, 0
  %v1309 = vsel %vm1308, %v1307, 0
  %v1310 = vshrl.u32 %v1309, 5
  %v1311 = vand.u32 %v1309, 31
  %v1312 = vsub.s32 32, %v1311
  %v1313 = vshrl.u32 683565275, %v1312
  %v1314 = vshll.u32 683565275, %v1311
  %v1315 = vshrl.u32 2475754826, %v1312
  %v1316 = vor.u32 %v1314, %v1315
  %v1317 = vshll.u32 2475754826, %v1311
  %v1318 = vshrl.u32 2131351028, %v1312
  %v1319 = vor.u32 %v1317, %v1318
  %v1320 = vshll.u32 2131351028, %v1311
  %v1321 = vshrl.u32 2102212464, %v1312
  %v1322 = vor.u32 %v1320, %v1321
  %v1323 = vshll.u32 2102212464, %v1311
  %v1324 = vshrl.u32 920167782, %v1312
  %v1325 = vor.u32 %v1323, %v1324
  %v1326 = vshll.u32 920167782, %v1311
  %v1327 = vshrl.u32 1326507024, %v1312
  %v1328 = vor.u32 %v1326, %v1327
  %vm1329 = vcmp.lt.s32.totalorder %v1310, 1
  %vm1330 = vcmp.lt.s32.totalorder %v1310, 2
  %vm1331 = vcmp.lt.s32.totalorder %v1310, 3
  %vm1332 = vcmp.lt.s32.totalorder %v1310, 4
  %v1333 = vsel %vm1329, %v1313, %v1316
  %v1334 = vsel %vm1332, %v1322, 2102212464
  %v1335 = vsel %vm1331, %v1319, %v1334
  %v1336 = vsel %vm1330, %v1333, %v1335
  %v1337 = vsel %vm1329, %v1316, %v1319
  %v1338 = vsel %vm1332, %v1325, 920167782
  %v1339 = vsel %vm1331, %v1322, %v1338
  %v1340 = vsel %vm1330, %v1337, %v1339
  %v1341 = vsel %vm1329, %v1319, %v1322
  %v1342 = vsel %vm1332, %v1328, 1326507024
  %v1343 = vsel %vm1331, %v1325, %v1342
  %v1344 = vsel %vm1330, %v1341, %v1343
  %v1345 = vshll.u32 %v1305, 8
  %v1346 = vmul.u32.u64.compose %v1345, %v1344
  %v1347 = vextract.low.u32 %v1346
  %v1348 = vextract.high.u32 %v1346
  %v1349 = vmul.u32.u64.compose %v1345, %v1340
  %v1350 = vextract.low.u32 %v1349
  %v1351 = vextract.high.u32 %v1349
  %v1352 = vmul.u32 %v1345, %v1336
  %v1353 = vadd.s32 %v1348, %v1350
  %vm1354 = vc.u32 %v1348, %v1350
  %v1355 = vadd.s32 %v1351, 1
  %v1356 = vsel %vm1354, %v1355, %v1351
  %v1357 = vadd.s32 %v1352, %v1356
  %v1358 = vadd.s32 %v1357, 536870912
  %v1359 = vshrl.u32 %v1358, 30
  %v1360 = vshll.u32 %v1359, 30
  %v1361 = vsub.s32 %v1357, %v1360
  %vm1362 = vcmp.lt.s32.totalorder %v1361, 0
  %v1363 = vsub.s32 0, %v1361
  %v1364 = vsel %vm1362, %v1363, %v1361
  %v1365 = vclz %v1364
  %v1366 = vsub.s32 %v1365, 2
  %vm1367 = vcmp.gt.s32.totalorder 0, %v1366
  %v1368 = vsel %vm1367, 0, %v1366
  %v1369 = vsub.s32 32, %v1368
  %v1370 = vshll.u32 %v1361, %v1368
  %v1371 = vshrl.u32 %v1353, %v1369
  %v1372 = vor.u32 %v1370, %v1371
  %v1373 = vsub.s32 4294967266, %v1368
  %v1374 = vadd.s32 %v1373, 127
  %v1375 = vshll.u32 %v1374, 23
  %v1376 = vor.u32 4788187, %v1375
  %v1377 = vand.u32 2147483647, %v1376
  %v1379 = vcvt.s32.f32 %v1372
  %v1380 = vmul.f32 %v1379, %v1377
  %v1381 = vxor.u32 %v1380, 2147483648
  %v1382 = vsel %vm1299, %v1381, %v1380
  %v1383 = vsub.s32 4, %v1359
  %v1384 = vsel %vm1299, %v1383, %v1359
  %v1385 = vsel %vm1298, %v675, %v1382
  %v1386 = vsel %vm1298, 0, %v1384
  %v1387 = vcosq.f32.pop %v1385
  %v1388 = vsinq.f32.pop %v1385
  %vm1389 = vweird.f32 %v675
  %v1390 = vand.u32 %v1386, 3
  %vm1391 = vcmp.lt.s32.totalorder %v1390, 2
  %vm1392 = vcmp.eq.s32.totalorder %v1390, 0
  %v1393 = vxor.u32 %v1388, 2147483648
  %v1394 = vsel %vm1392, %v1387, %v1393
  %vm1395 = vcmp.eq.s32.totalorder %v1390, 2
  %v1396 = vxor.u32 %v1387, 2147483648
  %v1397 = vsel %vm1395, %v1396, %v1388
  %v1398 = vsel %vm1391, %v1394, %v1397
  %v1399 = vsel %vm1389, nan, %v1398
  %v1400 = vand.u32 2147483647, %v677
  %vm1401 = vcmp.le.f32.partialorder %v1400, 0.7853982
  %vm1402 = vcmp.lt.s32.totalorder %v677, 0
  %v1403 = vand.u32 %v677, 2139095040
  %v1404 = vshrl.u32 %v1403, 23
  %v1405 = vsub.s32 %v1404, 127
  %v1406 = vand.u32 2147483647, %v677
  %v1407 = vand.u32 %v1406, 8388607
  %v1408 = vor.u32 %v1407, 8388608
  %v1409 = vsub.s32 0, %v1408
  %v1410 = vadd.s32 %v1405, 1
  %vm1411 = vcmp.gt.s32.totalorder %v1410, 0
  %v1412 = vsel %vm1411, %v1410, 0
  %v1413 = vshrl.u32 %v1412, 5
  %v1414 = vand.u32 %v1412, 31
  %v1415 = vsub.s32 32, %v1414
  %v1416 = vshrl.u32 683565275, %v1415
  %v1417 = vshll.u32 683565275, %v1414
  %v1418 = vshrl.u32 2475754826, %v1415
  %v1419 = vor.u32 %v1417, %v1418
  %v1420 = vshll.u32 2475754826, %v1414
  %v1421 = vshrl.u32 2131351028, %v1415
  %v1422 = vor.u32 %v1420, %v1421
  %v1423 = vshll.u32 2131351028, %v1414
  %v1424 = vshrl.u32 2102212464, %v1415
  %v1425 = vor.u32 %v1423, %v1424
  %v1426 = vshll.u32 2102212464, %v1414
  %v1427 = vshrl.u32 920167782, %v1415
  %v1428 = vor.u32 %v1426, %v1427
  %v1429 = vshll.u32 920167782, %v1414
  %v1430 = vshrl.u32 1326507024, %v1415
  %v1431 = vor.u32 %v1429, %v1430
  %vm1432 = vcmp.lt.s32.totalorder %v1413, 1
  %vm1433 = vcmp.lt.s32.totalorder %v1413, 2
  %vm1434 = vcmp.lt.s32.totalorder %v1413, 3
  %vm1435 = vcmp.lt.s32.totalorder %v1413, 4
  %v1436 = vsel %vm1432, %v1416, %v1419
  %v1437 = vsel %vm1435, %v1425, 2102212464
  %v1438 = vsel %vm1434, %v1422, %v1437
  %v1439 = vsel %vm1433, %v1436, %v1438
  %v1440 = vsel %vm1432, %v1419, %v1422
  %v1441 = vsel %vm1435, %v1428, 920167782
  %v1442 = vsel %vm1434, %v1425, %v1441
  %v1443 = vsel %vm1433, %v1440, %v1442
  %v1444 = vsel %vm1432, %v1422, %v1425
  %v1445 = vsel %vm1435, %v1431, 1326507024
  %v1446 = vsel %vm1434, %v1428, %v1445
  %v1447 = vsel %vm1433, %v1444, %v1446
  %v1448 = vshll.u32 %v1408, 8
  %v1449 = vmul.u32.u64.compose %v1448, %v1447
  %v1450 = vextract.low.u32 %v1449
  %v1451 = vextract.high.u32 %v1449
  %v1452 = vmul.u32.u64.compose %v1448, %v1443
  %v1453 = vextract.low.u32 %v1452
  %v1454 = vextract.high.u32 %v1452
  %v1455 = vmul.u32 %v1448, %v1439
  %v1456 = vadd.s32 %v1451, %v1453
  %vm1457 = vc.u32 %v1451, %v1453
  %v1458 = vadd.s32 %v1454, 1
  %v1459 = vsel %vm1457, %v1458, %v1454
  %v1460 = vadd.s32 %v1455, %v1459
  %v1461 = vadd.s32 %v1460, 536870912
  %v1462 = vshrl.u32 %v1461, 30
  %v1463 = vshll.u32 %v1462, 30
  %v1464 = vsub.s32 %v1460, %v1463
  %vm1465 = vcmp.lt.s32.totalorder %v1464, 0
  %v1466 = vsub.s32 0, %v1464
  %v1467 = vsel %vm1465, %v1466, %v1464
  %v1468 = vclz %v1467
  %v1469 = vsub.s32 %v1468, 2
  %vm1470 = vcmp.gt.s32.totalorder 0, %v1469
  %v1471 = vsel %vm1470, 0, %v1469
  %v1472 = vsub.s32 32, %v1471
  %v1473 = vshll.u32 %v1464, %v1471
  %v1474 = vshrl.u32 %v1456, %v1472
  %v1475 = vor.u32 %v1473, %v1474
  %v1476 = vsub.s32 4294967266, %v1471
  %v1477 = vadd.s32 %v1476, 127
  %v1478 = vshll.u32 %v1477, 23
  %v1479 = vor.u32 4788187, %v1478
  %v1480 = vand.u32 2147483647, %v1479
  %v1482 = vcvt.s32.f32 %v1475
  %v1483 = vmul.f32 %v1482, %v1480
  %v1484 = vxor.u32 %v1483, 2147483648
  %v1485 = vsel %vm1402, %v1484, %v1483
  %v1486 = vsub.s32 4, %v1462
  %v1487 = vsel %vm1402, %v1486, %v1462
  %v1488 = vsel %vm1401, %v677, %v1485
  %v1489 = vsel %vm1401, 0, %v1487
  %v1490 = vcosq.f32.pop %v1488
  %v1491 = vsinq.f32.pop %v1488
  %vm1492 = vweird.f32 %v677
  %v1493 = vand.u32 %v1489, 3
  %vm1494 = vcmp.lt.s32.totalorder %v1493, 2
  %vm1495 = vcmp.eq.s32.totalorder %v1493, 0
  %v1496 = vxor.u32 %v1491, 2147483648
  %v1497 = vsel %vm1495, %v1490, %v1496
  %vm1498 = vcmp.eq.s32.totalorder %v1493, 2
  %v1499 = vxor.u32 %v1490, 2147483648
  %v1500 = vsel %vm1498, %v1499, %v1491
  %v1501 = vsel %vm1494, %v1497, %v1500
  %v1502 = vsel %vm1492, nan, %v1501
  %v1503 = vand.u32 2147483647, %v592
  %vm1504 = vcmp.le.f32.partialorder %v1503, 0.7853982
  %vm1505 = vcmp.lt.s32.totalorder %v592, 0
  %v1506 = vand.u32 %v592, 2139095040
  %v1507 = vshrl.u32 %v1506, 23
  %v1508 = vsub.s32 %v1507, 127
  %v1509 = vand.u32 2147483647, %v592
  %v1510 = vand.u32 %v1509, 8388607
  %v1511 = vor.u32 %v1510, 8388608
  %v1512 = vsub.s32 0, %v1511
  %v1513 = vadd.s32 %v1508, 1
  %vm1514 = vcmp.gt.s32.totalorder %v1513, 0
  %v1515 = vsel %vm1514, %v1513, 0
  %v1516 = vshrl.u32 %v1515, 5
  %v1517 = vand.u32 %v1515, 31
  %v1518 = vsub.s32 32, %v1517
  %v1519 = vshrl.u32 683565275, %v1518
  %v1520 = vshll.u32 683565275, %v1517
  %v1521 = vshrl.u32 2475754826, %v1518
  %v1522 = vor.u32 %v1520, %v1521
  %v1523 = vshll.u32 2475754826, %v1517
  %v1524 = vshrl.u32 2131351028, %v1518
  %v1525 = vor.u32 %v1523, %v1524
  %v1526 = vshll.u32 2131351028, %v1517
  %v1527 = vshrl.u32 2102212464, %v1518
  %v1528 = vor.u32 %v1526, %v1527
  %v1529 = vshll.u32 2102212464, %v1517
  %v1530 = vshrl.u32 920167782, %v1518
  %v1531 = vor.u32 %v1529, %v1530
  %v1532 = vshll.u32 920167782, %v1517
  %v1533 = vshrl.u32 1326507024, %v1518
  %v1534 = vor.u32 %v1532, %v1533
  %vm1535 = vcmp.lt.s32.totalorder %v1516, 1
  %vm1536 = vcmp.lt.s32.totalorder %v1516, 2
  %vm1537 = vcmp.lt.s32.totalorder %v1516, 3
  %vm1538 = vcmp.lt.s32.totalorder %v1516, 4
  %v1539 = vsel %vm1535, %v1519, %v1522
  %v1540 = vsel %vm1538, %v1528, 2102212464
  %v1541 = vsel %vm1537, %v1525, %v1540
  %v1542 = vsel %vm1536, %v1539, %v1541
  %v1543 = vsel %vm1535, %v1522, %v1525
  %v1544 = vsel %vm1538, %v1531, 920167782
  %v1545 = vsel %vm1537, %v1528, %v1544
  %v1546 = vsel %vm1536, %v1543, %v1545
  %v1547 = vsel %vm1535, %v1525, %v1528
  %v1548 = vsel %vm1538, %v1534, 1326507024
  %v1549 = vsel %vm1537, %v1531, %v1548
  %v1550 = vsel %vm1536, %v1547, %v1549
  %v1551 = vshll.u32 %v1511, 8
  %v1552 = vmul.u32.u64.compose %v1551, %v1550
  %v1553 = vextract.low.u32 %v1552
  %v1554 = vextract.high.u32 %v1552
  %v1555 = vmul.u32.u64.compose %v1551, %v1546
  %v1556 = vextract.low.u32 %v1555
  %v1557 = vextract.high.u32 %v1555
  %v1558 = vmul.u32 %v1551, %v1542
  %v1559 = vadd.s32 %v1554, %v1556
  %vm1560 = vc.u32 %v1554, %v1556
  %v1561 = vadd.s32 %v1557, 1
  %v1562 = vsel %vm1560, %v1561, %v1557
  %v1563 = vadd.s32 %v1558, %v1562
  %v1564 = vadd.s32 %v1563, 536870912
  %v1565 = vshrl.u32 %v1564, 30
  %v1566 = vshll.u32 %v1565, 30
  %v1567 = vsub.s32 %v1563, %v1566
  %vm1568 = vcmp.lt.s32.totalorder %v1567, 0
  %v1569 = vsub.s32 0, %v1567
  %v1570 = vsel %vm1568, %v1569, %v1567
  %v1571 = vclz %v1570
  %v1572 = vsub.s32 %v1571, 2
  %vm1573 = vcmp.gt.s32.totalorder 0, %v1572
  %v1574 = vsel %vm1573, 0, %v1572
  %v1575 = vsub.s32 32, %v1574
  %v1576 = vshll.u32 %v1567, %v1574
  %v1577 = vshrl.u32 %v1559, %v1575
  %v1578 = vor.u32 %v1576, %v1577
  %v1579 = vsub.s32 4294967266, %v1574
  %v1580 = vadd.s32 %v1579, 127
  %v1581 = vshll.u32 %v1580, 23
  %v1582 = vor.u32 4788187, %v1581
  %v1583 = vand.u32 2147483647, %v1582
  %v1585 = vcvt.s32.f32 %v1578
  %v1586 = vmul.f32 %v1585, %v1583
  %v1587 = vxor.u32 %v1586, 2147483648
  %v1588 = vsel %vm1505, %v1587, %v1586
  %v1589 = vsub.s32 4, %v1565
  %v1590 = vsel %vm1505, %v1589, %v1565
  %v1591 = vsel %vm1504, %v592, %v1588
  %v1592 = vsel %vm1504, 0, %v1590
  %v1593 = vcosq.f32.pop %v1591
  %v1594 = vsinq.f32.pop %v1591
  %vm1595 = vweird.f32 %v592
  %v1596 = vadd.s32 %v1592, 3
  %v1597 = vand.u32 %v1596, 3
  %vm1598 = vcmp.lt.s32.totalorder %v1597, 2
  %vm1599 = vcmp.eq.s32.totalorder %v1597, 0
  %v1600 = vxor.u32 %v1594, 2147483648
  %v1601 = vsel %vm1599, %v1593, %v1600
  %vm1602 = vcmp.eq.s32.totalorder %v1597, 2
  %v1603 = vxor.u32 %v1593, 2147483648
  %v1604 = vsel %vm1602, %v1603, %v1594
  %v1605 = vsel %vm1598, %v1601, %v1604
  %v1606 = vsel %vm1595, nan, %v1605
  %v1607 = vand.u32 2147483647, %v594
  %vm1608 = vcmp.le.f32.partialorder %v1607, 0.7853982
  %vm1609 = vcmp.lt.s32.totalorder %v594, 0
  %v1610 = vand.u32 %v594, 2139095040
  %v1611 = vshrl.u32 %v1610, 23
  %v1612 = vsub.s32 %v1611, 127
  %v1613 = vand.u32 2147483647, %v594
  %v1614 = vand.u32 %v1613, 8388607
  %v1615 = vor.u32 %v1614, 8388608
  %v1616 = vsub.s32 0, %v1615
  %v1617 = vadd.s32 %v1612, 1
  %vm1618 = vcmp.gt.s32.totalorder %v1617, 0
  %v1619 = vsel %vm1618, %v1617, 0
  %v1620 = vshrl.u32 %v1619, 5
  %v1621 = vand.u32 %v1619, 31
  %v1622 = vsub.s32 32, %v1621
  %v1623 = vshrl.u32 683565275, %v1622
  %v1624 = vshll.u32 683565275, %v1621
  %v1625 = vshrl.u32 2475754826, %v1622
  %v1626 = vor.u32 %v1624, %v1625
  %v1627 = vshll.u32 2475754826, %v1621
  %v1628 = vshrl.u32 2131351028, %v1622
  %v1629 = vor.u32 %v1627, %v1628
  %v1630 = vshll.u32 2131351028, %v1621
  %v1631 = vshrl.u32 2102212464, %v1622
  %v1632 = vor.u32 %v1630, %v1631
  %v1633 = vshll.u32 2102212464, %v1621
  %v1634 = vshrl.u32 920167782, %v1622
  %v1635 = vor.u32 %v1633, %v1634
  %v1636 = vshll.u32 920167782, %v1621
  %v1637 = vshrl.u32 1326507024, %v1622
  %v1638 = vor.u32 %v1636, %v1637
  %vm1639 = vcmp.lt.s32.totalorder %v1620, 1
  %vm1640 = vcmp.lt.s32.totalorder %v1620, 2
  %vm1641 = vcmp.lt.s32.totalorder %v1620, 3
  %vm1642 = vcmp.lt.s32.totalorder %v1620, 4
  %v1643 = vsel %vm1639, %v1623, %v1626
  %v1644 = vsel %vm1642, %v1632, 2102212464
  %v1645 = vsel %vm1641, %v1629, %v1644
  %v1646 = vsel %vm1640, %v1643, %v1645
  %v1647 = vsel %vm1639, %v1626, %v1629
  %v1648 = vsel %vm1642, %v1635, 920167782
  %v1649 = vsel %vm1641, %v1632, %v1648
  %v1650 = vsel %vm1640, %v1647, %v1649
  %v1651 = vsel %vm1639, %v1629, %v1632
  %v1652 = vsel %vm1642, %v1638, 1326507024
  %v1653 = vsel %vm1641, %v1635, %v1652
  %v1654 = vsel %vm1640, %v1651, %v1653
  %v1655 = vshll.u32 %v1615, 8
  %v1656 = vmul.u32.u64.compose %v1655, %v1654
  %v1657 = vextract.low.u32 %v1656
  %v1658 = vextract.high.u32 %v1656
  %v1659 = vmul.u32.u64.compose %v1655, %v1650
  %v1660 = vextract.low.u32 %v1659
  %v1661 = vextract.high.u32 %v1659
  %v1662 = vmul.u32 %v1655, %v1646
  %v1663 = vadd.s32 %v1658, %v1660
  %vm1664 = vc.u32 %v1658, %v1660
  %v1665 = vadd.s32 %v1661, 1
  %v1666 = vsel %vm1664, %v1665, %v1661
  %v1667 = vadd.s32 %v1662, %v1666
  %v1668 = vadd.s32 %v1667, 536870912
  %v1669 = vshrl.u32 %v1668, 30
  %v1670 = vshll.u32 %v1669, 30
  %v1671 = vsub.s32 %v1667, %v1670
  %vm1672 = vcmp.lt.s32.totalorder %v1671, 0
  %v1673 = vsub.s32 0, %v1671
  %v1674 = vsel %vm1672, %v1673, %v1671
  %v1675 = vclz %v1674
  %v1676 = vsub.s32 %v1675, 2
  %vm1677 = vcmp.gt.s32.totalorder 0, %v1676
  %v1678 = vsel %vm1677, 0, %v1676
  %v1679 = vsub.s32 32, %v1678
  %v1680 = vshll.u32 %v1671, %v1678
  %v1681 = vshrl.u32 %v1663, %v1679
  %v1682 = vor.u32 %v1680, %v1681
  %v1683 = vsub.s32 4294967266, %v1678
  %v1684 = vadd.s32 %v1683, 127
  %v1685 = vshll.u32 %v1684, 23
  %v1686 = vor.u32 4788187, %v1685
  %v1687 = vand.u32 2147483647, %v1686
  %v1689 = vcvt.s32.f32 %v1682
  %v1690 = vmul.f32 %v1689, %v1687
  %v1691 = vxor.u32 %v1690, 2147483648
  %v1692 = vsel %vm1609, %v1691, %v1690
  %v1693 = vsub.s32 4, %v1669
  %v1694 = vsel %vm1609, %v1693, %v1669
  %v1695 = vsel %vm1608, %v594, %v1692
  %v1696 = vsel %vm1608, 0, %v1694
  %v1697 = vcosq.f32.pop %v1695
  %v1698 = vsinq.f32.pop %v1695
  %vm1699 = vweird.f32 %v594
  %v1700 = vadd.s32 %v1696, 3
  %v1701 = vand.u32 %v1700, 3
  %vm1702 = vcmp.lt.s32.totalorder %v1701, 2
  %vm1703 = vcmp.eq.s32.totalorder %v1701, 0
  %v1704 = vxor.u32 %v1698, 2147483648
  %v1705 = vsel %vm1703, %v1697, %v1704
  %vm1706 = vcmp.eq.s32.totalorder %v1701, 2
  %v1707 = vxor.u32 %v1697, 2147483648
  %v1708 = vsel %vm1706, %v1707, %v1698
  %v1709 = vsel %vm1702, %v1705, %v1708
  %v1710 = vsel %vm1699, nan, %v1709
  %v1711 = vand.u32 2147483647, %v669
  %vm1712 = vcmp.le.f32.partialorder %v1711, 0.7853982
  %vm1713 = vcmp.lt.s32.totalorder %v669, 0
  %v1714 = vand.u32 %v669, 2139095040
  %v1715 = vshrl.u32 %v1714, 23
  %v1716 = vsub.s32 %v1715, 127
  %v1717 = vand.u32 2147483647, %v669
  %v1718 = vand.u32 %v1717, 8388607
  %v1719 = vor.u32 %v1718, 8388608
  %v1720 = vsub.s32 0, %v1719
  %v1721 = vadd.s32 %v1716, 1
  %vm1722 = vcmp.gt.s32.totalorder %v1721, 0
  %v1723 = vsel %vm1722, %v1721, 0
  %v1724 = vshrl.u32 %v1723, 5
  %v1725 = vand.u32 %v1723, 31
  %v1726 = vsub.s32 32, %v1725
  %v1727 = vshrl.u32 683565275, %v1726
  %v1728 = vshll.u32 683565275, %v1725
  %v1729 = vshrl.u32 2475754826, %v1726
  %v1730 = vor.u32 %v1728, %v1729
  %v1731 = vshll.u32 2475754826, %v1725
  %v1732 = vshrl.u32 2131351028, %v1726
  %v1733 = vor.u32 %v1731, %v1732
  %v1734 = vshll.u32 2131351028, %v1725
  %v1735 = vshrl.u32 2102212464, %v1726
  %v1736 = vor.u32 %v1734, %v1735
  %v1737 = vshll.u32 2102212464, %v1725
  %v1738 = vshrl.u32 920167782, %v1726
  %v1739 = vor.u32 %v1737, %v1738
  %v1740 = vshll.u32 920167782, %v1725
  %v1741 = vshrl.u32 1326507024, %v1726
  %v1742 = vor.u32 %v1740, %v1741
  %vm1743 = vcmp.lt.s32.totalorder %v1724, 1
  %vm1744 = vcmp.lt.s32.totalorder %v1724, 2
  %vm1745 = vcmp.lt.s32.totalorder %v1724, 3
  %vm1746 = vcmp.lt.s32.totalorder %v1724, 4
  %v1747 = vsel %vm1743, %v1727, %v1730
  %v1748 = vsel %vm1746, %v1736, 2102212464
  %v1749 = vsel %vm1745, %v1733, %v1748
  %v1750 = vsel %vm1744, %v1747, %v1749
  %v1751 = vsel %vm1743, %v1730, %v1733
  %v1752 = vsel %vm1746, %v1739, 920167782
  %v1753 = vsel %vm1745, %v1736, %v1752
  %v1754 = vsel %vm1744, %v1751, %v1753
  %v1755 = vsel %vm1743, %v1733, %v1736
  %v1756 = vsel %vm1746, %v1742, 1326507024
  %v1757 = vsel %vm1745, %v1739, %v1756
  %v1758 = vsel %vm1744, %v1755, %v1757
  %v1759 = vshll.u32 %v1719, 8
  %v1760 = vmul.u32.u64.compose %v1759, %v1758
  %v1761 = vextract.low.u32 %v1760
  %v1762 = vextract.high.u32 %v1760
  %v1763 = vmul.u32.u64.compose %v1759, %v1754
  %v1764 = vextract.low.u32 %v1763
  %v1765 = vextract.high.u32 %v1763
  %v1766 = vmul.u32 %v1759, %v1750
  %v1767 = vadd.s32 %v1762, %v1764
  %vm1768 = vc.u32 %v1762, %v1764
  %v1769 = vadd.s32 %v1765, 1
  %v1770 = vsel %vm1768, %v1769, %v1765
  %v1771 = vadd.s32 %v1766, %v1770
  %v1772 = vadd.s32 %v1771, 536870912
  %v1773 = vshrl.u32 %v1772, 30
  %v1774 = vshll.u32 %v1773, 30
  %v1775 = vsub.s32 %v1771, %v1774
  %vm1776 = vcmp.lt.s32.totalorder %v1775, 0
  %v1777 = vsub.s32 0, %v1775
  %v1778 = vsel %vm1776, %v1777, %v1775
  %v1779 = vclz %v1778
  %v1780 = vsub.s32 %v1779, 2
  %vm1781 = vcmp.gt.s32.totalorder 0, %v1780
  %v1782 = vsel %vm1781, 0, %v1780
  %v1783 = vsub.s32 32, %v1782
  %v1784 = vshll.u32 %v1775, %v1782
  %v1785 = vshrl.u32 %v1767, %v1783
  %v1786 = vor.u32 %v1784, %v1785
  %v1787 = vsub.s32 4294967266, %v1782
  %v1788 = vadd.s32 %v1787, 127
  %v1789 = vshll.u32 %v1788, 23
  %v1790 = vor.u32 4788187, %v1789
  %v1791 = vand.u32 2147483647, %v1790
  %v1793 = vcvt.s32.f32 %v1786
  %v1794 = vmul.f32 %v1793, %v1791
  %v1795 = vxor.u32 %v1794, 2147483648
  %v1796 = vsel %vm1713, %v1795, %v1794
  %v1797 = vsub.s32 4, %v1773
  %v1798 = vsel %vm1713, %v1797, %v1773
  %v1799 = vsel %vm1712, %v669, %v1796
  %v1800 = vsel %vm1712, 0, %v1798
  %v1801 = vcosq.f32.pop %v1799
  %v1802 = vsinq.f32.pop %v1799
  %vm1803 = vweird.f32 %v669
  %v1804 = vadd.s32 %v1800, 3
  %v1805 = vand.u32 %v1804, 3
  %vm1806 = vcmp.lt.s32.totalorder %v1805, 2
  %vm1807 = vcmp.eq.s32.totalorder %v1805, 0
  %v1808 = vxor.u32 %v1802, 2147483648
  %v1809 = vsel %vm1807, %v1801, %v1808
  %vm1810 = vcmp.eq.s32.totalorder %v1805, 2
  %v1811 = vxor.u32 %v1801, 2147483648
  %v1812 = vsel %vm1810, %v1811, %v1802
  %v1813 = vsel %vm1806, %v1809, %v1812
  %v1814 = vsel %vm1803, nan, %v1813
  %v1815 = vand.u32 2147483647, %v671
  %vm1816 = vcmp.le.f32.partialorder %v1815, 0.7853982
  %vm1817 = vcmp.lt.s32.totalorder %v671, 0
  %v1818 = vand.u32 %v671, 2139095040
  %v1819 = vshrl.u32 %v1818, 23
  %v1820 = vsub.s32 %v1819, 127
  %v1821 = vand.u32 2147483647, %v671
  %v1822 = vand.u32 %v1821, 8388607
  %v1823 = vor.u32 %v1822, 8388608
  %v1824 = vsub.s32 0, %v1823
  %v1825 = vadd.s32 %v1820, 1
  %vm1826 = vcmp.gt.s32.totalorder %v1825, 0
  %v1827 = vsel %vm1826, %v1825, 0
  %v1828 = vshrl.u32 %v1827, 5
  %v1829 = vand.u32 %v1827, 31
  %v1830 = vsub.s32 32, %v1829
  %v1831 = vshrl.u32 683565275, %v1830
  %v1832 = vshll.u32 683565275, %v1829
  %v1833 = vshrl.u32 2475754826, %v1830
  %v1834 = vor.u32 %v1832, %v1833
  %v1835 = vshll.u32 2475754826, %v1829
  %v1836 = vshrl.u32 2131351028, %v1830
  %v1837 = vor.u32 %v1835, %v1836
  %v1838 = vshll.u32 2131351028, %v1829
  %v1839 = vshrl.u32 2102212464, %v1830
  %v1840 = vor.u32 %v1838, %v1839
  %v1841 = vshll.u32 2102212464, %v1829
  %v1842 = vshrl.u32 920167782, %v1830
  %v1843 = vor.u32 %v1841, %v1842
  %v1844 = vshll.u32 920167782, %v1829
  %v1845 = vshrl.u32 1326507024, %v1830
  %v1846 = vor.u32 %v1844, %v1845
  %vm1847 = vcmp.lt.s32.totalorder %v1828, 1
  %vm1848 = vcmp.lt.s32.totalorder %v1828, 2
  %vm1849 = vcmp.lt.s32.totalorder %v1828, 3
  %vm1850 = vcmp.lt.s32.totalorder %v1828, 4
  %v1851 = vsel %vm1847, %v1831, %v1834
  %v1852 = vsel %vm1850, %v1840, 2102212464
  %v1853 = vsel %vm1849, %v1837, %v1852
  %v1854 = vsel %vm1848, %v1851, %v1853
  %v1855 = vsel %vm1847, %v1834, %v1837
  %v1856 = vsel %vm1850, %v1843, 920167782
  %v1857 = vsel %vm1849, %v1840, %v1856
  %v1858 = vsel %vm1848, %v1855, %v1857
  %v1859 = vsel %vm1847, %v1837, %v1840
  %v1860 = vsel %vm1850, %v1846, 1326507024
  %v1861 = vsel %vm1849, %v1843, %v1860
  %v1862 = vsel %vm1848, %v1859, %v1861
  %v1863 = vshll.u32 %v1823, 8
  %v1864 = vmul.u32.u64.compose %v1863, %v1862
  %v1865 = vextract.low.u32 %v1864
  %v1866 = vextract.high.u32 %v1864
  %v1867 = vmul.u32.u64.compose %v1863, %v1858
  %v1868 = vextract.low.u32 %v1867
  %v1869 = vextract.high.u32 %v1867
  %v1870 = vmul.u32 %v1863, %v1854
  %v1871 = vadd.s32 %v1866, %v1868
  %vm1872 = vc.u32 %v1866, %v1868
  %v1873 = vadd.s32 %v1869, 1
  %v1874 = vsel %vm1872, %v1873, %v1869
  %v1875 = vadd.s32 %v1870, %v1874
  %v1876 = vadd.s32 %v1875, 536870912
  %v1877 = vshrl.u32 %v1876, 30
  %v1878 = vshll.u32 %v1877, 30
  %v1879 = vsub.s32 %v1875, %v1878
  %vm1880 = vcmp.lt.s32.totalorder %v1879, 0
  %v1881 = vsub.s32 0, %v1879
  %v1882 = vsel %vm1880, %v1881, %v1879
  %v1883 = vclz %v1882
  %v1884 = vsub.s32 %v1883, 2
  %vm1885 = vcmp.gt.s32.totalorder 0, %v1884
  %v1886 = vsel %vm1885, 0, %v1884
  %v1887 = vsub.s32 32, %v1886
  %v1888 = vshll.u32 %v1879, %v1886
  %v1889 = vshrl.u32 %v1871, %v1887
  %v1890 = vor.u32 %v1888, %v1889
  %v1891 = vsub.s32 4294967266, %v1886
  %v1892 = vadd.s32 %v1891, 127
  %v1893 = vshll.u32 %v1892, 23
  %v1894 = vor.u32 4788187, %v1893
  %v1895 = vand.u32 2147483647, %v1894
  %v1897 = vcvt.s32.f32 %v1890
  %v1898 = vmul.f32 %v1897, %v1895
  %v1899 = vxor.u32 %v1898, 2147483648
  %v1900 = vsel %vm1817, %v1899, %v1898
  %v1901 = vsub.s32 4, %v1877
  %v1902 = vsel %vm1817, %v1901, %v1877
  %v1903 = vsel %vm1816, %v671, %v1900
  %v1904 = vsel %vm1816, 0, %v1902
  %v1905 = vcosq.f32.pop %v1903
  %v1906 = vsinq.f32.pop %v1903
  %vm1907 = vweird.f32 %v671
  %v1908 = vadd.s32 %v1904, 3
  %v1909 = vand.u32 %v1908, 3
  %vm1910 = vcmp.lt.s32.totalorder %v1909, 2
  %vm1911 = vcmp.eq.s32.totalorder %v1909, 0
  %v1912 = vxor.u32 %v1906, 2147483648
  %v1913 = vsel %vm1911, %v1905, %v1912
  %vm1914 = vcmp.eq.s32.totalorder %v1909, 2
  %v1915 = vxor.u32 %v1905, 2147483648
  %v1916 = vsel %vm1914, %v1915, %v1906
  %v1917 = vsel %vm1910, %v1913, %v1916
  %v1918 = vsel %vm1907, nan, %v1917
  %v1919 = vand.u32 2147483647, %v598
  %vm1920 = vcmp.le.f32.partialorder %v1919, 0.7853982
  %vm1921 = vcmp.lt.s32.totalorder %v598, 0
  %v1922 = vand.u32 %v598, 2139095040
  %v1923 = vshrl.u32 %v1922, 23
  %v1924 = vsub.s32 %v1923, 127
  %v1925 = vand.u32 2147483647, %v598
  %v1926 = vand.u32 %v1925, 8388607
  %v1927 = vor.u32 %v1926, 8388608
  %v1928 = vsub.s32 0, %v1927
  %v1929 = vadd.s32 %v1924, 1
  %vm1930 = vcmp.gt.s32.totalorder %v1929, 0
  %v1931 = vsel %vm1930, %v1929, 0
  %v1932 = vshrl.u32 %v1931, 5
  %v1933 = vand.u32 %v1931, 31
  %v1934 = vsub.s32 32, %v1933
  %v1935 = vshrl.u32 683565275, %v1934
  %v1936 = vshll.u32 683565275, %v1933
  %v1937 = vshrl.u32 2475754826, %v1934
  %v1938 = vor.u32 %v1936, %v1937
  %v1939 = vshll.u32 2475754826, %v1933
  %v1940 = vshrl.u32 2131351028, %v1934
  %v1941 = vor.u32 %v1939, %v1940
  %v1942 = vshll.u32 2131351028, %v1933
  %v1943 = vshrl.u32 2102212464, %v1934
  %v1944 = vor.u32 %v1942, %v1943
  %v1945 = vshll.u32 2102212464, %v1933
  %v1946 = vshrl.u32 920167782, %v1934
  %v1947 = vor.u32 %v1945, %v1946
  %v1948 = vshll.u32 920167782, %v1933
  %v1949 = vshrl.u32 1326507024, %v1934
  %v1950 = vor.u32 %v1948, %v1949
  %vm1951 = vcmp.lt.s32.totalorder %v1932, 1
  %vm1952 = vcmp.lt.s32.totalorder %v1932, 2
  %vm1953 = vcmp.lt.s32.totalorder %v1932, 3
  %vm1954 = vcmp.lt.s32.totalorder %v1932, 4
  %v1955 = vsel %vm1951, %v1935, %v1938
  %v1956 = vsel %vm1954, %v1944, 2102212464
  %v1957 = vsel %vm1953, %v1941, %v1956
  %v1958 = vsel %vm1952, %v1955, %v1957
  %v1959 = vsel %vm1951, %v1938, %v1941
  %v1960 = vsel %vm1954, %v1947, 920167782
  %v1961 = vsel %vm1953, %v1944, %v1960
  %v1962 = vsel %vm1952, %v1959, %v1961
  %v1963 = vsel %vm1951, %v1941, %v1944
  %v1964 = vsel %vm1954, %v1950, 1326507024
  %v1965 = vsel %vm1953, %v1947, %v1964
  %v1966 = vsel %vm1952, %v1963, %v1965
  %v1967 = vshll.u32 %v1927, 8
  %v1968 = vmul.u32.u64.compose %v1967, %v1966
  %v1969 = vextract.low.u32 %v1968
  %v1970 = vextract.high.u32 %v1968
  %v1971 = vmul.u32.u64.compose %v1967, %v1962
  %v1972 = vextract.low.u32 %v1971
  %v1973 = vextract.high.u32 %v1971
  %v1974 = vmul.u32 %v1967, %v1958
  %v1975 = vadd.s32 %v1970, %v1972
  %vm1976 = vc.u32 %v1970, %v1972
  %v1977 = vadd.s32 %v1973, 1
  %v1978 = vsel %vm1976, %v1977, %v1973
  %v1979 = vadd.s32 %v1974, %v1978
  %v1980 = vadd.s32 %v1979, 536870912
  %v1981 = vshrl.u32 %v1980, 30
  %v1982 = vshll.u32 %v1981, 30
  %v1983 = vsub.s32 %v1979, %v1982
  %vm1984 = vcmp.lt.s32.totalorder %v1983, 0
  %v1985 = vsub.s32 0, %v1983
  %v1986 = vsel %vm1984, %v1985, %v1983
  %v1987 = vclz %v1986
  %v1988 = vsub.s32 %v1987, 2
  %vm1989 = vcmp.gt.s32.totalorder 0, %v1988
  %v1990 = vsel %vm1989, 0, %v1988
  %v1991 = vsub.s32 32, %v1990
  %v1992 = vshll.u32 %v1983, %v1990
  %v1993 = vshrl.u32 %v1975, %v1991
  %v1994 = vor.u32 %v1992, %v1993
  %v1995 = vsub.s32 4294967266, %v1990
  %v1996 = vadd.s32 %v1995, 127
  %v1997 = vshll.u32 %v1996, 23
  %v1998 = vor.u32 4788187, %v1997
  %v1999 = vand.u32 2147483647, %v1998
  %v2001 = vcvt.s32.f32 %v1994
  %v2002 = vmul.f32 %v2001, %v1999
  %v2003 = vxor.u32 %v2002, 2147483648
  %v2004 = vsel %vm1921, %v2003, %v2002
  %v2005 = vsub.s32 4, %v1981
  %v2006 = vsel %vm1921, %v2005, %v1981
  %v2007 = vsel %vm1920, %v598, %v2004
  %v2008 = vsel %vm1920, 0, %v2006
  %v2009 = vcosq.f32.pop %v2007
  %v2010 = vsinq.f32.pop %v2007
  %vm2011 = vweird.f32 %v598
  %v2012 = vadd.s32 %v2008, 3
  %v2013 = vand.u32 %v2012, 3
  %vm2014 = vcmp.lt.s32.totalorder %v2013, 2
  %vm2015 = vcmp.eq.s32.totalorder %v2013, 0
  %v2016 = vxor.u32 %v2010, 2147483648
  %v2017 = vsel %vm2015, %v2009, %v2016
  %vm2018 = vcmp.eq.s32.totalorder %v2013, 2
  %v2019 = vxor.u32 %v2009, 2147483648
  %v2020 = vsel %vm2018, %v2019, %v2010
  %v2021 = vsel %vm2014, %v2017, %v2020
  %v2022 = vsel %vm2011, nan, %v2021
  %v2023 = vand.u32 2147483647, %v600
  %vm2024 = vcmp.le.f32.partialorder %v2023, 0.7853982
  %vm2025 = vcmp.lt.s32.totalorder %v600, 0
  %v2026 = vand.u32 %v600, 2139095040
  %v2027 = vshrl.u32 %v2026, 23
  %v2028 = vsub.s32 %v2027, 127
  %v2029 = vand.u32 2147483647, %v600
  %v2030 = vand.u32 %v2029, 8388607
  %v2031 = vor.u32 %v2030, 8388608
  %v2032 = vsub.s32 0, %v2031
  %v2033 = vadd.s32 %v2028, 1
  %vm2034 = vcmp.gt.s32.totalorder %v2033, 0
  %v2035 = vsel %vm2034, %v2033, 0
  %v2036 = vshrl.u32 %v2035, 5
  %v2037 = vand.u32 %v2035, 31
  %v2038 = vsub.s32 32, %v2037
  %v2039 = vshrl.u32 683565275, %v2038
  %v2040 = vshll.u32 683565275, %v2037
  %v2041 = vshrl.u32 2475754826, %v2038
  %v2042 = vor.u32 %v2040, %v2041
  %v2043 = vshll.u32 2475754826, %v2037
  %v2044 = vshrl.u32 2131351028, %v2038
  %v2045 = vor.u32 %v2043, %v2044
  %v2046 = vshll.u32 2131351028, %v2037
  %v2047 = vshrl.u32 2102212464, %v2038
  %v2048 = vor.u32 %v2046, %v2047
  %v2049 = vshll.u32 2102212464, %v2037
  %v2050 = vshrl.u32 920167782, %v2038
  %v2051 = vor.u32 %v2049, %v2050
  %v2052 = vshll.u32 920167782, %v2037
  %v2053 = vshrl.u32 1326507024, %v2038
  %v2054 = vor.u32 %v2052, %v2053
  %vm2055 = vcmp.lt.s32.totalorder %v2036, 1
  %vm2056 = vcmp.lt.s32.totalorder %v2036, 2
  %vm2057 = vcmp.lt.s32.totalorder %v2036, 3
  %vm2058 = vcmp.lt.s32.totalorder %v2036, 4
  %v2059 = vsel %vm2055, %v2039, %v2042
  %v2060 = vsel %vm2058, %v2048, 2102212464
  %v2061 = vsel %vm2057, %v2045, %v2060
  %v2062 = vsel %vm2056, %v2059, %v2061
  %v2063 = vsel %vm2055, %v2042, %v2045
  %v2064 = vsel %vm2058, %v2051, 920167782
  %v2065 = vsel %vm2057, %v2048, %v2064
  %v2066 = vsel %vm2056, %v2063, %v2065
  %v2067 = vsel %vm2055, %v2045, %v2048
  %v2068 = vsel %vm2058, %v2054, 1326507024
  %v2069 = vsel %vm2057, %v2051, %v2068
  %v2070 = vsel %vm2056, %v2067, %v2069
  %v2071 = vshll.u32 %v2031, 8
  %v2072 = vmul.u32.u64.compose %v2071, %v2070
  %v2073 = vextract.low.u32 %v2072
  %v2074 = vextract.high.u32 %v2072
  %v2075 = vmul.u32.u64.compose %v2071, %v2066
  %v2076 = vextract.low.u32 %v2075
  %v2077 = vextract.high.u32 %v2075
  %v2078 = vmul.u32 %v2071, %v2062
  %v2079 = vadd.s32 %v2074, %v2076
  %vm2080 = vc.u32 %v2074, %v2076
  %v2081 = vadd.s32 %v2077, 1
  %v2082 = vsel %vm2080, %v2081, %v2077
  %v2083 = vadd.s32 %v2078, %v2082
  %v2084 = vadd.s32 %v2083, 536870912
  %v2085 = vshrl.u32 %v2084, 30
  %v2086 = vshll.u32 %v2085, 30
  %v2087 = vsub.s32 %v2083, %v2086
  %vm2088 = vcmp.lt.s32.totalorder %v2087, 0
  %v2089 = vsub.s32 0, %v2087
  %v2090 = vsel %vm2088, %v2089, %v2087
  %v2091 = vclz %v2090
  %v2092 = vsub.s32 %v2091, 2
  %vm2093 = vcmp.gt.s32.totalorder 0, %v2092
  %v2094 = vsel %vm2093, 0, %v2092
  %v2095 = vsub.s32 32, %v2094
  %v2096 = vshll.u32 %v2087, %v2094
  %v2097 = vshrl.u32 %v2079, %v2095
  %v2098 = vor.u32 %v2096, %v2097
  %v2099 = vsub.s32 4294967266, %v2094
  %v2100 = vadd.s32 %v2099, 127
  %v2101 = vshll.u32 %v2100, 23
  %v2102 = vor.u32 4788187, %v2101
  %v2103 = vand.u32 2147483647, %v2102
  %v2105 = vcvt.s32.f32 %v2098
  %v2106 = vmul.f32 %v2105, %v2103
  %v2107 = vxor.u32 %v2106, 2147483648
  %v2108 = vsel %vm2025, %v2107, %v2106
  %v2109 = vsub.s32 4, %v2085
  %v2110 = vsel %vm2025, %v2109, %v2085
  %v2111 = vsel %vm2024, %v600, %v2108
  %v2112 = vsel %vm2024, 0, %v2110
  %v2113 = vcosq.f32.pop %v2111
  %v2114 = vsinq.f32.pop %v2111
  %vm2115 = vweird.f32 %v600
  %v2116 = vadd.s32 %v2112, 3
  %v2117 = vand.u32 %v2116, 3
  %vm2118 = vcmp.lt.s32.totalorder %v2117, 2
  %vm2119 = vcmp.eq.s32.totalorder %v2117, 0
  %v2120 = vxor.u32 %v2114, 2147483648
  %v2121 = vsel %vm2119, %v2113, %v2120
  %vm2122 = vcmp.eq.s32.totalorder %v2117, 2
  %v2123 = vxor.u32 %v2113, 2147483648
  %v2124 = vsel %vm2122, %v2123, %v2114
  %v2125 = vsel %vm2118, %v2121, %v2124
  %v2126 = vsel %vm2115, nan, %v2125
  %v2127 = vand.u32 2147483647, %v675
  %vm2128 = vcmp.le.f32.partialorder %v2127, 0.7853982
  %vm2129 = vcmp.lt.s32.totalorder %v675, 0
  %v2130 = vand.u32 %v675, 2139095040
  %v2131 = vshrl.u32 %v2130, 23
  %v2132 = vsub.s32 %v2131, 127
  %v2133 = vand.u32 2147483647, %v675
  %v2134 = vand.u32 %v2133, 8388607
  %v2135 = vor.u32 %v2134, 8388608
  %v2136 = vsub.s32 0, %v2135
  %v2137 = vadd.s32 %v2132, 1
  %vm2138 = vcmp.gt.s32.totalorder %v2137, 0
  %v2139 = vsel %vm2138, %v2137, 0
  %v2140 = vshrl.u32 %v2139, 5
  %v2141 = vand.u32 %v2139, 31
  %v2142 = vsub.s32 32, %v2141
  %v2143 = vshrl.u32 683565275, %v2142
  %v2144 = vshll.u32 683565275, %v2141
  %v2145 = vshrl.u32 2475754826, %v2142
  %v2146 = vor.u32 %v2144, %v2145
  %v2147 = vshll.u32 2475754826, %v2141
  %v2148 = vshrl.u32 2131351028, %v2142
  %v2149 = vor.u32 %v2147, %v2148
  %v2150 = vshll.u32 2131351028, %v2141
  %v2151 = vshrl.u32 2102212464, %v2142
  %v2152 = vor.u32 %v2150, %v2151
  %v2153 = vshll.u32 2102212464, %v2141
  %v2154 = vshrl.u32 920167782, %v2142
  %v2155 = vor.u32 %v2153, %v2154
  %v2156 = vshll.u32 920167782, %v2141
  %v2157 = vshrl.u32 1326507024, %v2142
  %v2158 = vor.u32 %v2156, %v2157
  %vm2159 = vcmp.lt.s32.totalorder %v2140, 1
  %vm2160 = vcmp.lt.s32.totalorder %v2140, 2
  %vm2161 = vcmp.lt.s32.totalorder %v2140, 3
  %vm2162 = vcmp.lt.s32.totalorder %v2140, 4
  %v2163 = vsel %vm2159, %v2143, %v2146
  %v2164 = vsel %vm2162, %v2152, 2102212464
  %v2165 = vsel %vm2161, %v2149, %v2164
  %v2166 = vsel %vm2160, %v2163, %v2165
  %v2167 = vsel %vm2159, %v2146, %v2149
  %v2168 = vsel %vm2162, %v2155, 920167782
  %v2169 = vsel %vm2161, %v2152, %v2168
  %v2170 = vsel %vm2160, %v2167, %v2169
  %v2171 = vsel %vm2159, %v2149, %v2152
  %v2172 = vsel %vm2162, %v2158, 1326507024
  %v2173 = vsel %vm2161, %v2155, %v2172
  %v2174 = vsel %vm2160, %v2171, %v2173
  %v2175 = vshll.u32 %v2135, 8
  %v2176 = vmul.u32.u64.compose %v2175, %v2174
  %v2177 = vextract.low.u32 %v2176
  %v2178 = vextract.high.u32 %v2176
  %v2179 = vmul.u32.u64.compose %v2175, %v2170
  %v2180 = vextract.low.u32 %v2179
  %v2181 = vextract.high.u32 %v2179
  %v2182 = vmul.u32 %v2175, %v2166
  %v2183 = vadd.s32 %v2178, %v2180
  %vm2184 = vc.u32 %v2178, %v2180
  %v2185 = vadd.s32 %v2181, 1
  %v2186 = vsel %vm2184, %v2185, %v2181
  %v2187 = vadd.s32 %v2182, %v2186
  %v2188 = vadd.s32 %v2187, 536870912
  %v2189 = vshrl.u32 %v2188, 30
  %v2190 = vshll.u32 %v2189, 30
  %v2191 = vsub.s32 %v2187, %v2190
  %vm2192 = vcmp.lt.s32.totalorder %v2191, 0
  %v2193 = vsub.s32 0, %v2191
  %v2194 = vsel %vm2192, %v2193, %v2191
  %v2195 = vclz %v2194
  %v2196 = vsub.s32 %v2195, 2
  %vm2197 = vcmp.gt.s32.totalorder 0, %v2196
  %v2198 = vsel %vm2197, 0, %v2196
  %v2199 = vsub.s32 32, %v2198
  %v2200 = vshll.u32 %v2191, %v2198
  %v2201 = vshrl.u32 %v2183, %v2199
  %v2202 = vor.u32 %v2200, %v2201
  %v2203 = vsub.s32 4294967266, %v2198
  %v2204 = vadd.s32 %v2203, 127
  %v2205 = vshll.u32 %v2204, 23
  %v2206 = vor.u32 4788187, %v2205
  %v2207 = vand.u32 2147483647, %v2206
  %v2209 = vcvt.s32.f32 %v2202
  %v2210 = vmul.f32 %v2209, %v2207
  %v2211 = vxor.u32 %v2210, 2147483648
  %v2212 = vsel %vm2129, %v2211, %v2210
  %v2213 = vsub.s32 4, %v2189
  %v2214 = vsel %vm2129, %v2213, %v2189
  %v2215 = vsel %vm2128, %v675, %v2212
  %v2216 = vsel %vm2128, 0, %v2214
  %v2217 = vcosq.f32.pop %v2215
  %v2218 = vsinq.f32.pop %v2215
  %vm2219 = vweird.f32 %v675
  %v2220 = vadd.s32 %v2216, 3
  %v2221 = vand.u32 %v2220, 3
  %vm2222 = vcmp.lt.s32.totalorder %v2221, 2
  %vm2223 = vcmp.eq.s32.totalorder %v2221, 0
  %v2224 = vxor.u32 %v2218, 2147483648
  %v2225 = vsel %vm2223, %v2217, %v2224
  %vm2226 = vcmp.eq.s32.totalorder %v2221, 2
  %v2227 = vxor.u32 %v2217, 2147483648
  %v2228 = vsel %vm2226, %v2227, %v2218
  %v2229 = vsel %vm2222, %v2225, %v2228
  %v2230 = vsel %vm2219, nan, %v2229
  %v2231 = vand.u32 2147483647, %v677
  %vm2232 = vcmp.le.f32.partialorder %v2231, 0.7853982
  %vm2233 = vcmp.lt.s32.totalorder %v677, 0
  %v2234 = vand.u32 %v677, 2139095040
  %v2235 = vshrl.u32 %v2234, 23
  %v2236 = vsub.s32 %v2235, 127
  %v2237 = vand.u32 2147483647, %v677
  %v2238 = vand.u32 %v2237, 8388607
  %v2239 = vor.u32 %v2238, 8388608
  %v2240 = vsub.s32 0, %v2239
  %v2241 = vadd.s32 %v2236, 1
  %vm2242 = vcmp.gt.s32.totalorder %v2241, 0
  %v2243 = vsel %vm2242, %v2241, 0
  %v2244 = vshrl.u32 %v2243, 5
  %v2245 = vand.u32 %v2243, 31
  %v2246 = vsub.s32 32, %v2245
  %v2247 = vshrl.u32 683565275, %v2246
  %v2248 = vshll.u32 683565275, %v2245
  %v2249 = vshrl.u32 2475754826, %v2246
  %v2250 = vor.u32 %v2248, %v2249
  %v2251 = vshll.u32 2475754826, %v2245
  %v2252 = vshrl.u32 2131351028, %v2246
  %v2253 = vor.u32 %v2251, %v2252
  %v2254 = vshll.u32 2131351028, %v2245
  %v2255 = vshrl.u32 2102212464, %v2246
  %v2256 = vor.u32 %v2254, %v2255
  %v2257 = vshll.u32 2102212464, %v2245
  %v2258 = vshrl.u32 920167782, %v2246
  %v2259 = vor.u32 %v2257, %v2258
  %v2260 = vshll.u32 920167782, %v2245
  %v2261 = vshrl.u32 1326507024, %v2246
  %v2262 = vor.u32 %v2260, %v2261
  %vm2263 = vcmp.lt.s32.totalorder %v2244, 1
  %vm2264 = vcmp.lt.s32.totalorder %v2244, 2
  %vm2265 = vcmp.lt.s32.totalorder %v2244, 3
  %vm2266 = vcmp.lt.s32.totalorder %v2244, 4
  %v2267 = vsel %vm2263, %v2247, %v2250
  %v2268 = vsel %vm2266, %v2256, 2102212464
  %v2269 = vsel %vm2265, %v2253, %v2268
  %v2270 = vsel %vm2264, %v2267, %v2269
  %v2271 = vsel %vm2263, %v2250, %v2253
  %v2272 = vsel %vm2266, %v2259, 920167782
  %v2273 = vsel %vm2265, %v2256, %v2272
  %v2274 = vsel %vm2264, %v2271, %v2273
  %v2275 = vsel %vm2263, %v2253, %v2256
  %v2276 = vsel %vm2266, %v2262, 1326507024
  %v2277 = vsel %vm2265, %v2259, %v2276
  %v2278 = vsel %vm2264, %v2275, %v2277
  %v2279 = vshll.u32 %v2239, 8
  %v2280 = vmul.u32.u64.compose %v2279, %v2278
  %v2281 = vextract.low.u32 %v2280
  %v2282 = vextract.high.u32 %v2280
  %v2283 = vmul.u32.u64.compose %v2279, %v2274
  %v2284 = vextract.low.u32 %v2283
  %v2285 = vextract.high.u32 %v2283
  %v2286 = vmul.u32 %v2279, %v2270
  %v2287 = vadd.s32 %v2282, %v2284
  %vm2288 = vc.u32 %v2282, %v2284
  %v2289 = vadd.s32 %v2285, 1
  %v2290 = vsel %vm2288, %v2289, %v2285
  %v2291 = vadd.s32 %v2286, %v2290
  %v2292 = vadd.s32 %v2291, 536870912
  %v2293 = vshrl.u32 %v2292, 30
  %v2294 = vshll.u32 %v2293, 30
  %v2295 = vsub.s32 %v2291, %v2294
  %vm2296 = vcmp.lt.s32.totalorder %v2295, 0
  %v2297 = vsub.s32 0, %v2295
  %v2298 = vsel %vm2296, %v2297, %v2295
  %v2299 = vclz %v2298
  %v2300 = vsub.s32 %v2299, 2
  %vm2301 = vcmp.gt.s32.totalorder 0, %v2300
  %v2302 = vsel %vm2301, 0, %v2300
  %v2303 = vsub.s32 32, %v2302
  %v2304 = vshll.u32 %v2295, %v2302
  %v2305 = vshrl.u32 %v2287, %v2303
  %v2306 = vor.u32 %v2304, %v2305
  %v2307 = vsub.s32 4294967266, %v2302
  %v2308 = vadd.s32 %v2307, 127
  %v2309 = vshll.u32 %v2308, 23
  %v2310 = vor.u32 4788187, %v2309
  %v2311 = vand.u32 2147483647, %v2310
  %v2313 = vcvt.s32.f32 %v2306
  %v2314 = vmul.f32 %v2313, %v2311
  %v2315 = vxor.u32 %v2314, 2147483648
  %v2316 = vsel %vm2233, %v2315, %v2314
  %v2317 = vsub.s32 4, %v2293
  %v2318 = vsel %vm2233, %v2317, %v2293
  %v2319 = vsel %vm2232, %v677, %v2316
  %v2320 = vsel %vm2232, 0, %v2318
  %v2321 = vcosq.f32.pop %v2319
  %v2322 = vsinq.f32.pop %v2319
  %vm2323 = vweird.f32 %v677
  %v2324 = vadd.s32 %v2320, 3
  %v2325 = vand.u32 %v2324, 3
  %vm2326 = vcmp.lt.s32.totalorder %v2325, 2
  %vm2327 = vcmp.eq.s32.totalorder %v2325, 0
  %v2328 = vxor.u32 %v2322, 2147483648
  %v2329 = vsel %vm2327, %v2321, %v2328
  %vm2330 = vcmp.eq.s32.totalorder %v2325, 2
  %v2331 = vxor.u32 %v2321, 2147483648
  %v2332 = vsel %vm2330, %v2331, %v2322
  %v2333 = vsel %vm2326, %v2329, %v2332
  %v2334 = vsel %vm2323, nan, %v2333
  %v2335 = vld [vmem:[%s5] sm:$0xff]
  %v2336 = vld [vmem:[%s5 + $0x8] sm:$0xff]
  %v2337 = vld [vmem:[%s5 + $0x10] sm:$0xff]
  %v2338 = vld [vmem:[%s5 + $0x18] sm:$0xff]
  %v2339 = vld [vmem:[%s6] sm:$0xff]
  %v2340 = vld [vmem:[%s6 + $0x8] sm:$0xff]
  %v2341 = vld [vmem:[%s6 + $0x10] sm:$0xff]
  %v2342 = vld [vmem:[%s6 + $0x18] sm:$0xff]
  %vm2343 = vcmask 130048
  %v2345 = vsel %vm2343, %v2339, 0
  %v2348 = vsel %vm2343, %v2340, 0
  %v2351 = vsel %vm2343, %v2341, 0
  %v2354 = vsel %vm2343, %v2342, 0
  %2356 = vmatprep.subr.mxu0 %v1710
  %2357 = vmatpush1.msra.mxu0 %v1606
  %2358 = vmatprep.subr.mxu0 %v2126
  %2359 = vmatpush1.msra.mxu0 %v2022
  %2360 = vmatprep.subr.mxu0 0.0
  %2361 = vmatpush1.msra.mxu0 0.0
  %2362 = vmatprep.subr.mxu0 0.0
  %2363 = vmatpush1.msra.mxu0 0.0
  %2364 = vmatprep.subr.mxu0 0.0
  %2365 = vmatpush1.msra.mxu0 0.0
  %2366 = vmatprep.subr.mxu0 0.0
  %2367 = vmatpush1.msra.mxu0 0.0
  %2368 = vmatprep.subr.mxu0 0.0
  %2369 = vmatpush1.msra.mxu0 0.0
  %2370 = vmatprep.subr.mxu0 0.0
  %2371 = vmatpush1.msra.mxu0 0.0
  %2372 = vmatprep.subr.mxu0 0.0
  %2373 = vmatpush1.msra.mxu0 0.0
  %2374 = vmatprep.subr.mxu0 0.0
  %2375 = vmatpush1.msra.mxu0 0.0
  %2376 = vmatprep.subr.mxu0 0.0
  %2377 = vmatpush1.msra.mxu0 0.0
  %2378 = vmatprep.subr.mxu0 0.0
  %2379 = vmatpush1.msra.mxu0 0.0
  %2380 = vmatprep.subr.mxu0 0.0
  %2381 = vmatpush1.msra.mxu0 0.0
  %2382 = vmatprep.subr.mxu0 0.0
  %2383 = vmatpush1.msra.mxu0 0.0
  %2384 = vmatprep.subr.mxu0 0.0
  %2385 = vmatpush1.msra.mxu0 0.0
  %2386 = vmatprep.subr.mxu0 0.0
  %2387 = vmatpush1.msra.mxu0 0.0
  %2388 = vmatprep.subr.mxu0 0.0
  %2389 = vmatpush1.msra.mxu0 0.0
  %2390 = vmatprep.subr.mxu0 0.0
  %2391 = vmatpush1.msra.mxu0 0.0
  %2392 = vmatprep.subr.mxu0 0.0
  %2393 = vmatpush1.msra.mxu0 0.0
  %2394 = vmatprep.subr.mxu0 0.0
  %2395 = vmatpush1.msra.mxu0 0.0
  %2396 = vmatprep.subr.mxu0 0.0
  %2397 = vmatpush1.msra.mxu0 0.0
  %2398 = vmatprep.subr.mxu0 0.0
  %2399 = vmatpush1.msra.mxu0 0.0
  %2400 = vmatprep.subr.mxu0 0.0
  %2401 = vmatpush1.msra.mxu0 0.0
  %2402 = vmatprep.subr.mxu0 0.0
  %2403 = vmatpush1.msra.mxu0 0.0
  %2404 = vmatprep.subr.mxu0 0.0
  %2405 = vmatpush1.msra.mxu0 0.0
  %2406 = vmatprep.subr.mxu0 0.0
  %2407 = vmatpush1.msra.mxu0 0.0
  %2408 = vmatprep.subr.mxu0 0.0
  %2409 = vmatpush1.msra.mxu0 0.0
  %2410 = vmatprep.subr.mxu0 0.0
  %2411 = vmatpush1.msra.mxu0 0.0
  %2412 = vmatprep.subr.mxu0 0.0
  %2413 = vmatpush1.msra.mxu0 0.0
  %2414 = vmatprep.subr.mxu0 0.0
  %2415 = vmatpush1.msra.mxu0 0.0
  %2416 = vmatprep.subr.mxu0 0.0
  %2417 = vmatpush1.msra.mxu0 0.0
  %2418 = vmatprep.subr.mxu0 0.0
  %2419 = vmatpush1.msra.mxu0 0.0
  %2420 = vmatprep.mubr.f32.mxu0 0.0
  %2421 = vmatmul.mubr.f32.gmra.mrb[0].mxu0 %v2345
  %v2422 = vpop.f32.mrb[0].mxu0
  %v2423 = vadd.f32 0.0, %v2422
  %v2424 = vpop.f32.mrb[0].mxu0
  %v2425 = vadd.f32 0.0, %v2424
  %2426 = vmatprep.mubr.f32.mxu0 0.0
  %2427 = vmatmul.mubr.f32.gmra.mrb[0].mxu0 %v2348
  %v2428 = vpop.f32.mrb[0].mxu0
  %v2429 = vadd.f32 0.0, %v2428
  %v2430 = vpop.f32.mrb[0].mxu0
  %v2431 = vadd.f32 0.0, %v2430
  %2432 = vmatprep.mubr.f32.mxu0 0.0
  %2433 = vmatmul.mubr.f32.gmra.mrb[0].mxu0 %v2351
  %v2434 = vpop.f32.mrb[0].mxu0
  %v2435 = vadd.f32 0.0, %v2434
  %v2436 = vpop.f32.mrb[0].mxu0
  %v2437 = vadd.f32 0.0, %v2436
  %2438 = vmatprep.mubr.f32.mxu0 0.0
  %2439 = vmatmul.mubr.f32.gmra.mrb[0].mxu0 %v2354
  %v2440 = vpop.f32.mrb[0].mxu0
  %v2441 = vadd.f32 0.0, %v2440
  %v2442 = vpop.f32.mrb[0].mxu0
  %v2443 = vadd.f32 0.0, %v2442
  %2444 = vdwg.mxu0
  %2445 = vmatprep.subr.mxu0 %v1918
  %2446 = vmatpush1.msra.mxu0 %v1814
  %2447 = vmatprep.subr.mxu0 %v2334
  %2448 = vmatpush1.msra.mxu0 %v2230
  %2449 = vmatprep.subr.mxu0 0.0
  %2450 = vmatpush1.msra.mxu0 0.0
  %2451 = vmatprep.subr.mxu0 0.0
  %2452 = vmatpush1.msra.mxu0 0.0
  %2453 = vmatprep.subr.mxu0 0.0
  %2454 = vmatpush1.msra.mxu0 0.0
  %2455 = vmatprep.subr.mxu0 0.0
  %2456 = vmatpush1.msra.mxu0 0.0
  %2457 = vmatprep.subr.mxu0 0.0
  %2458 = vmatpush1.msra.mxu0 0.0
  %2459 = vmatprep.subr.mxu0 0.0
  %2460 = vmatpush1.msra.mxu0 0.0
  %2461 = vmatprep.subr.mxu0 0.0
  %2462 = vmatpush1.msra.mxu0 0.0
  %2463 = vmatprep.subr.mxu0 0.0
  %2464 = vmatpush1.msra.mxu0 0.0
  %2465 = vmatprep.subr.mxu0 0.0
  %2466 = vmatpush1.msra.mxu0 0.0
  %2467 = vmatprep.subr.mxu0 0.0
  %2468 = vmatpush1.msra.mxu0 0.0
  %2469 = vmatprep.subr.mxu0 0.0
  %2470 = vmatpush1.msra.mxu0 0.0
  %2471 = vmatprep.subr.mxu0 0.0
  %2472 = vmatpush1.msra.mxu0 0.0
  %2473 = vmatprep.subr.mxu0 0.0
  %2474 = vmatpush1.msra.mxu0 0.0
  %2475 = vmatprep.subr.mxu0 0.0
  %2476 = vmatpush1.msra.mxu0 0.0
  %2477 = vmatprep.subr.mxu0 0.0
  %2478 = vmatpush1.msra.mxu0 0.0
  %2479 = vmatprep.subr.mxu0 0.0
  %2480 = vmatpush1.msra.mxu0 0.0
  %2481 = vmatprep.subr.mxu0 0.0
  %2482 = vmatpush1.msra.mxu0 0.0
  %2483 = vmatprep.subr.mxu0 0.0
  %2484 = vmatpush1.msra.mxu0 0.0
  %2485 = vmatprep.subr.mxu0 0.0
  %2486 = vmatpush1.msra.mxu0 0.0
  %2487 = vmatprep.subr.mxu0 0.0
  %2488 = vmatpush1.msra.mxu0 0.0
  %2489 = vmatprep.subr.mxu0 0.0
  %2490 = vmatpush1.msra.mxu0 0.0
  %2491 = vmatprep.subr.mxu0 0.0
  %2492 = vmatpush1.msra.mxu0 0.0
  %2493 = vmatprep.subr.mxu0 0.0
  %2494 = vmatpush1.msra.mxu0 0.0
  %2495 = vmatprep.subr.mxu0 0.0
  %2496 = vmatpush1.msra.mxu0 0.0
  %2497 = vmatprep.subr.mxu0 0.0
  %2498 = vmatpush1.msra.mxu0 0.0
  %2499 = vmatprep.subr.mxu0 0.0
  %2500 = vmatpush1.msra.mxu0 0.0
  %2501 = vmatprep.subr.mxu0 0.0
  %2502 = vmatpush1.msra.mxu0 0.0
  %2503 = vmatprep.subr.mxu0 0.0
  %2504 = vmatpush1.msra.mxu0 0.0
  %2505 = vmatprep.subr.mxu0 0.0
  %2506 = vmatpush1.msra.mxu0 0.0
  %2507 = vmatprep.subr.mxu0 0.0
  %2508 = vmatpush1.msra.mxu0 0.0
  %2509 = vmatprep.mubr.f32.mxu0 0.0
  %2510 = vmatmul.mubr.f32.gmra.mrb[0].mxu0 %v2345
  %v2511 = vpop.f32.mrb[0].mxu0
  %v2512 = vadd.f32 0.0, %v2511
  %v2513 = vpop.f32.mrb[0].mxu0
  %v2514 = vadd.f32 0.0, %v2513
  %2515 = vmatprep.mubr.f32.mxu0 0.0
  %2516 = vmatmul.mubr.f32.gmra.mrb[0].mxu0 %v2348
  %v2517 = vpop.f32.mrb[0].mxu0
  %v2518 = vadd.f32 0.0, %v2517
  %v2519 = vpop.f32.mrb[0].mxu0
  %v2520 = vadd.f32 0.0, %v2519
  %2521 = vmatprep.mubr.f32.mxu0 0.0
  %2522 = vmatmul.mubr.f32.gmra.mrb[0].mxu0 %v2351
  %v2523 = vpop.f32.mrb[0].mxu0
  %v2524 = vadd.f32 0.0, %v2523
  %v2525 = vpop.f32.mrb[0].mxu0
  %v2526 = vadd.f32 0.0, %v2525
  %2527 = vmatprep.mubr.f32.mxu0 0.0
  %2528 = vmatmul.mubr.f32.gmra.mrb[0].mxu0 %v2354
  %v2529 = vpop.f32.mrb[0].mxu0
  %v2530 = vadd.f32 0.0, %v2529
  %v2531 = vpop.f32.mrb[0].mxu0
  %v2532 = vadd.f32 0.0, %v2531
  %2533 = vdwg.mxu0
  %v2535 = vsel %vm2343, %v2335, 0
  %v2538 = vsel %vm2343, %v2336, 0
  %v2541 = vsel %vm2343, %v2337, 0
  %v2544 = vsel %vm2343, %v2338, 0
  %2546 = vmatprep.subr.mxu0 %v884
  %2547 = vmatpush1.msra.mxu0 %v781
  %2548 = vmatprep.subr.mxu0 %v1296
  %2549 = vmatpush1.msra.mxu0 %v1193
  %2550 = vmatprep.subr.mxu0 0.0
  %2551 = vmatpush1.msra.mxu0 0.0
  %2552 = vmatprep.subr.mxu0 0.0
  %2553 = vmatpush1.msra.mxu0 0.0
  %2554 = vmatprep.subr.mxu0 0.0
  %2555 = vmatpush1.msra.mxu0 0.0
  %2556 = vmatprep.subr.mxu0 0.0
  %2557 = vmatpush1.msra.mxu0 0.0
  %2558 = vmatprep.subr.mxu0 0.0
  %2559 = vmatpush1.msra.mxu0 0.0
  %2560 = vmatprep.subr.mxu0 0.0
  %2561 = vmatpush1.msra.mxu0 0.0
  %2562 = vmatprep.subr.mxu0 0.0
  %2563 = vmatpush1.msra.mxu0 0.0
  %2564 = vmatprep.subr.mxu0 0.0
  %2565 = vmatpush1.msra.mxu0 0.0
  %2566 = vmatprep.subr.mxu0 0.0
  %2567 = vmatpush1.msra.mxu0 0.0
  %2568 = vmatprep.subr.mxu0 0.0
  %2569 = vmatpush1.msra.mxu0 0.0
  %2570 = vmatprep.subr.mxu0 0.0
  %2571 = vmatpush1.msra.mxu0 0.0
  %2572 = vmatprep.subr.mxu0 0.0
  %2573 = vmatpush1.msra.mxu0 0.0
  %2574 = vmatprep.subr.mxu0 0.0
  %2575 = vmatpush1.msra.mxu0 0.0
  %2576 = vmatprep.subr.mxu0 0.0
  %2577 = vmatpush1.msra.mxu0 0.0
  %2578 = vmatprep.subr.mxu0 0.0
  %2579 = vmatpush1.msra.mxu0 0.0
  %2580 = vmatprep.subr.mxu0 0.0
  %2581 = vmatpush1.msra.mxu0 0.0
  %2582 = vmatprep.subr.mxu0 0.0
  %2583 = vmatpush1.msra.mxu0 0.0
  %2584 = vmatprep.subr.mxu0 0.0
  %2585 = vmatpush1.msra.mxu0 0.0
  %2586 = vmatprep.subr.mxu0 0.0
  %2587 = vmatpush1.msra.mxu0 0.0
  %2588 = vmatprep.subr.mxu0 0.0
  %2589 = vmatpush1.msra.mxu0 0.0
  %2590 = vmatprep.subr.mxu0 0.0
  %2591 = vmatpush1.msra.mxu0 0.0
  %2592 = vmatprep.subr.mxu0 0.0
  %2593 = vmatpush1.msra.mxu0 0.0
  %2594 = vmatprep.subr.mxu0 0.0
  %2595 = vmatpush1.msra.mxu0 0.0
  %2596 = vmatprep.subr.mxu0 0.0
  %2597 = vmatpush1.msra.mxu0 0.0
  %2598 = vmatprep.subr.mxu0 0.0
  %2599 = vmatpush1.msra.mxu0 0.0
  %2600 = vmatprep.subr.mxu0 0.0
  %2601 = vmatpush1.msra.mxu0 0.0
  %2602 = vmatprep.subr.mxu0 0.0
  %2603 = vmatpush1.msra.mxu0 0.0
  %2604 = vmatprep.subr.mxu0 0.0
  %2605 = vmatpush1.msra.mxu0 0.0
  %2606 = vmatprep.subr.mxu0 0.0
  %2607 = vmatpush1.msra.mxu0 0.0
  %2608 = vmatprep.subr.mxu0 0.0
  %2609 = vmatpush1.msra.mxu0 0.0
  %2610 = vmatprep.mubr.f32.mxu0 0.0
  %2611 = vmatmul.mubr.f32.gmra.mrb[0].mxu0 %v2535
  %v2612 = vpop.f32.mrb[0].mxu0
  %v2613 = vadd.f32 %v2423, %v2612
  %v2614 = vpop.f32.mrb[0].mxu0
  %v2615 = vadd.f32 %v2425, %v2614
  %2616 = vmatprep.mubr.f32.mxu0 0.0
  %2617 = vmatmul.mubr.f32.gmra.mrb[0].mxu0 %v2538
  %v2618 = vpop.f32.mrb[0].mxu0
  %v2619 = vadd.f32 %v2429, %v2618
  %v2620 = vpop.f32.mrb[0].mxu0
  %v2621 = vadd.f32 %v2431, %v2620
  %2622 = vmatprep.mubr.f32.mxu0 0.0
  %2623 = vmatmul.mubr.f32.gmra.mrb[0].mxu0 %v2541
  %v2624 = vpop.f32.mrb[0].mxu0
  %v2625 = vadd.f32 %v2435, %v2624
  %v2626 = vpop.f32.mrb[0].mxu0
  %v2627 = vadd.f32 %v2437, %v2626
  %2628 = vmatprep.mubr.f32.mxu0 0.0
  %2629 = vmatmul.mubr.f32.gmra.mrb[0].mxu0 %v2544
  %v2630 = vpop.f32.mrb[0].mxu0
  %v2631 = vadd.f32 %v2441, %v2630
  %v2632 = vpop.f32.mrb[0].mxu0
  %v2633 = vadd.f32 %v2443, %v2632
  %2634 = vdwg.mxu0
  %2635 = vmatprep.subr.mxu0 %v1090
  %2636 = vmatpush1.msra.mxu0 %v987
  %2637 = vmatprep.subr.mxu0 %v1502
  %2638 = vmatpush1.msra.mxu0 %v1399
  %2639 = vmatprep.subr.mxu0 0.0
  %2640 = vmatpush1.msra.mxu0 0.0
  %2641 = vmatprep.subr.mxu0 0.0
  %2642 = vmatpush1.msra.mxu0 0.0
  %2643 = vmatprep.subr.mxu0 0.0
  %2644 = vmatpush1.msra.mxu0 0.0
  %2645 = vmatprep.subr.mxu0 0.0
  %2646 = vmatpush1.msra.mxu0 0.0
  %2647 = vmatprep.subr.mxu0 0.0
  %2648 = vmatpush1.msra.mxu0 0.0
  %2649 = vmatprep.subr.mxu0 0.0
  %2650 = vmatpush1.msra.mxu0 0.0
  %2651 = vmatprep.subr.mxu0 0.0
  %2652 = vmatpush1.msra.mxu0 0.0
  %2653 = vmatprep.subr.mxu0 0.0
  %2654 = vmatpush1.msra.mxu0 0.0
  %2655 = vmatprep.subr.mxu0 0.0
  %2656 = vmatpush1.msra.mxu0 0.0
  %2657 = vmatprep.subr.mxu0 0.0
  %2658 = vmatpush1.msra.mxu0 0.0
  %2659 = vmatprep.subr.mxu0 0.0
  %2660 = vmatpush1.msra.mxu0 0.0
  %2661 = vmatprep.subr.mxu0 0.0
  %2662 = vmatpush1.msra.mxu0 0.0
  %2663 = vmatprep.subr.mxu0 0.0
  %2664 = vmatpush1.msra.mxu0 0.0
  %2665 = vmatprep.subr.mxu0 0.0
  %2666 = vmatpush1.msra.mxu0 0.0
  %2667 = vmatprep.subr.mxu0 0.0
  %2668 = vmatpush1.msra.mxu0 0.0
  %2669 = vmatprep.subr.mxu0 0.0
  %2670 = vmatpush1.msra.mxu0 0.0
  %2671 = vmatprep.subr.mxu0 0.0
  %2672 = vmatpush1.msra.mxu0 0.0
  %2673 = vmatprep.subr.mxu0 0.0
  %2674 = vmatpush1.msra.mxu0 0.0
  %2675 = vmatprep.subr.mxu0 0.0
  %2676 = vmatpush1.msra.mxu0 0.0
  %2677 = vmatprep.subr.mxu0 0.0
  %2678 = vmatpush1.msra.mxu0 0.0
  %2679 = vmatprep.subr.mxu0 0.0
  %2680 = vmatpush1.msra.mxu0 0.0
  %2681 = vmatprep.subr.mxu0 0.0
  %2682 = vmatpush1.msra.mxu0 0.0
  %2683 = vmatprep.subr.mxu0 0.0
  %2684 = vmatpush1.msra.mxu0 0.0
  %2685 = vmatprep.subr.mxu0 0.0
  %2686 = vmatpush1.msra.mxu0 0.0
  %2687 = vmatprep.subr.mxu0 0.0
  %2688 = vmatpush1.msra.mxu0 0.0
  %2689 = vmatprep.subr.mxu0 0.0
  %2690 = vmatpush1.msra.mxu0 0.0
  %2691 = vmatprep.subr.mxu0 0.0
  %2692 = vmatpush1.msra.mxu0 0.0
  %2693 = vmatprep.subr.mxu0 0.0
  %2694 = vmatpush1.msra.mxu0 0.0
  %2695 = vmatprep.subr.mxu0 0.0
  %2696 = vmatpush1.msra.mxu0 0.0
  %2697 = vmatprep.subr.mxu0 0.0
  %2698 = vmatpush1.msra.mxu0 0.0
  %2699 = vmatprep.mubr.f32.mxu0 0.0
  %2700 = vmatmul.mubr.f32.gmra.mrb[0].mxu0 %v2535
  %v2701 = vpop.f32.mrb[0].mxu0
  %v2702 = vadd.f32 %v2512, %v2701
  %v2703 = vpop.f32.mrb[0].mxu0
  %v2704 = vadd.f32 %v2514, %v2703
  %2705 = vmatprep.mubr.f32.mxu0 0.0
  %2706 = vmatmul.mubr.f32.gmra.mrb[0].mxu0 %v2538
  %v2707 = vpop.f32.mrb[0].mxu0
  %v2708 = vadd.f32 %v2518, %v2707
  %v2709 = vpop.f32.mrb[0].mxu0
  %v2710 = vadd.f32 %v2520, %v2709
  %2711 = vmatprep.mubr.f32.mxu0 0.0
  %2712 = vmatmul.mubr.f32.gmra.mrb[0].mxu0 %v2541
  %v2713 = vpop.f32.mrb[0].mxu0
  %v2714 = vadd.f32 %v2524, %v2713
  %v2715 = vpop.f32.mrb[0].mxu0
  %v2716 = vadd.f32 %v2526, %v2715
  %2717 = vmatprep.mubr.f32.mxu0 0.0
  %2718 = vmatmul.mubr.f32.gmra.mrb[0].mxu0 %v2544
  %v2719 = vpop.f32.mrb[0].mxu0
  %v2720 = vadd.f32 %v2530, %v2719
  %v2721 = vpop.f32.mrb[0].mxu0
  %v2722 = vadd.f32 %v2532, %v2721
  %2723 = vdwg.mxu0
  %v2724 = vld [vmem:[%s7] sm:$0xf]
  %v2725 = vmul.f32 %v2613, %v2613
  %v2726 = vmul.f32 %v2615, %v2615
  %v2727 = vmul.f32 %v2702, %v2702
  %v2728 = vmul.f32 %v2704, %v2704
  %v2729 = vmul.f32 %v2619, %v2619
  %v2730 = vmul.f32 %v2621, %v2621
  %v2731 = vmul.f32 %v2708, %v2708
  %v2732 = vmul.f32 %v2710, %v2710
  %v2733 = vmul.f32 %v2625, %v2625
  %v2734 = vmul.f32 %v2627, %v2627
  %v2735 = vmul.f32 %v2714, %v2714
  %v2736 = vmul.f32 %v2716, %v2716
  %v2737 = vmul.f32 %v2631, %v2631
  %v2738 = vmul.f32 %v2633, %v2633
  %v2739 = vmul.f32 %v2720, %v2720
  %v2740 = vmul.f32 %v2722, %v2722
  %vm2741 = vcmask 261120
  %v2743 = vsel %vm2741, %v2724, 0
  %2745 = vmatprep.subr.mxu0 %v2726
  %2746 = vmatpush1.msra.mxu0 %v2725
  %2747 = vmatprep.subr.mxu0 %v2730
  %2748 = vmatpush1.msra.mxu0 %v2729
  %2749 = vmatprep.subr.mxu0 %v2734
  %2750 = vmatpush1.msra.mxu0 %v2733
  %2751 = vmatprep.subr.mxu0 %v2738
  %2752 = vmatpush1.msra.mxu0 %v2737
  %2753 = vmatprep.subr.mxu0 0.0
  %2754 = vmatpush1.msra.mxu0 0.0
  %2755 = vmatprep.subr.mxu0 0.0
  %2756 = vmatpush1.msra.mxu0 0.0
  %2757 = vmatprep.subr.mxu0 0.0
  %2758 = vmatpush1.msra.mxu0 0.0
  %2759 = vmatprep.subr.mxu0 0.0
  %2760 = vmatpush1.msra.mxu0 0.0
  %2761 = vmatprep.subr.mxu0 0.0
  %2762 = vmatpush1.msra.mxu0 0.0
  %2763 = vmatprep.subr.mxu0 0.0
  %2764 = vmatpush1.msra.mxu0 0.0
  %2765 = vmatprep.subr.mxu0 0.0
  %2766 = vmatpush1.msra.mxu0 0.0
  %2767 = vmatprep.subr.mxu0 0.0
  %2768 = vmatpush1.msra.mxu0 0.0
  %2769 = vmatprep.subr.mxu0 0.0
  %2770 = vmatpush1.msra.mxu0 0.0
  %2771 = vmatprep.subr.mxu0 0.0
  %2772 = vmatpush1.msra.mxu0 0.0
  %2773 = vmatprep.subr.mxu0 0.0
  %2774 = vmatpush1.msra.mxu0 0.0
  %2775 = vmatprep.subr.mxu0 0.0
  %2776 = vmatpush1.msra.mxu0 0.0
  %2777 = vmatprep.subr.mxu0 0.0
  %2778 = vmatpush1.msra.mxu0 0.0
  %2779 = vmatprep.subr.mxu0 0.0
  %2780 = vmatpush1.msra.mxu0 0.0
  %2781 = vmatprep.subr.mxu0 0.0
  %2782 = vmatpush1.msra.mxu0 0.0
  %2783 = vmatprep.subr.mxu0 0.0
  %2784 = vmatpush1.msra.mxu0 0.0
  %2785 = vmatprep.subr.mxu0 0.0
  %2786 = vmatpush1.msra.mxu0 0.0
  %2787 = vmatprep.subr.mxu0 0.0
  %2788 = vmatpush1.msra.mxu0 0.0
  %2789 = vmatprep.subr.mxu0 0.0
  %2790 = vmatpush1.msra.mxu0 0.0
  %2791 = vmatprep.subr.mxu0 0.0
  %2792 = vmatpush1.msra.mxu0 0.0
  %2793 = vmatprep.subr.mxu0 0.0
  %2794 = vmatpush1.msra.mxu0 0.0
  %2795 = vmatprep.subr.mxu0 0.0
  %2796 = vmatpush1.msra.mxu0 0.0
  %2797 = vmatprep.subr.mxu0 0.0
  %2798 = vmatpush1.msra.mxu0 0.0
  %2799 = vmatprep.subr.mxu0 0.0
  %2800 = vmatpush1.msra.mxu0 0.0
  %2801 = vmatprep.subr.mxu0 0.0
  %2802 = vmatpush1.msra.mxu0 0.0
  %2803 = vmatprep.subr.mxu0 0.0
  %2804 = vmatpush1.msra.mxu0 0.0
  %2805 = vmatprep.subr.mxu0 0.0
  %2806 = vmatpush1.msra.mxu0 0.0
  %2807 = vmatprep.subr.mxu0 0.0
  %2808 = vmatpush1.msra.mxu0 0.0
  %2809 = vmatprep.mubr.f32.mxu0 0.0
  %2810 = vmatmul.mubr.f32.gmra.mrb[0].mxu0 %v2743
  %v2811 = vpop.f32.mrb[0].mxu0
  %v2812 = vadd.f32 0.0, %v2811
  %v2813 = vpop.f32.mrb[0].mxu0
  %v2814 = vadd.f32 0.0, %v2813
  %2815 = vdwg.mxu0
  %2816 = vmatprep.subr.mxu0 %v2728
  %2817 = vmatpush1.msra.mxu0 %v2727
  %2818 = vmatprep.subr.mxu0 %v2732
  %2819 = vmatpush1.msra.mxu0 %v2731
  %2820 = vmatprep.subr.mxu0 %v2736
  %2821 = vmatpush1.msra.mxu0 %v2735
  %2822 = vmatprep.subr.mxu0 %v2740
  %2823 = vmatpush1.msra.mxu0 %v2739
  %2824 = vmatprep.subr.mxu0 0.0
  %2825 = vmatpush1.msra.mxu0 0.0
  %2826 = vmatprep.subr.mxu0 0.0
  %2827 = vmatpush1.msra.mxu0 0.0
  %2828 = vmatprep.subr.mxu0 0.0
  %2829 = vmatpush1.msra.mxu0 0.0
  %2830 = vmatprep.subr.mxu0 0.0
  %2831 = vmatpush1.msra.mxu0 0.0
  %2832 = vmatprep.subr.mxu0 0.0
  %2833 = vmatpush1.msra.mxu0 0.0
  %2834 = vmatprep.subr.mxu0 0.0
  %2835 = vmatpush1.msra.mxu0 0.0
  %2836 = vmatprep.subr.mxu0 0.0
  %2837 = vmatpush1.msra.mxu0 0.0
  %2838 = vmatprep.subr.mxu0 0.0
  %2839 = vmatpush1.msra.mxu0 0.0
  %2840 = vmatprep.subr.mxu0 0.0
  %2841 = vmatpush1.msra.mxu0 0.0
  %2842 = vmatprep.subr.mxu0 0.0
  %2843 = vmatpush1.msra.mxu0 0.0
  %2844 = vmatprep.subr.mxu0 0.0
  %2845 = vmatpush1.msra.mxu0 0.0
  %2846 = vmatprep.subr.mxu0 0.0
  %2847 = vmatpush1.msra.mxu0 0.0
  %2848 = vmatprep.subr.mxu0 0.0
  %2849 = vmatpush1.msra.mxu0 0.0
  %2850 = vmatprep.subr.mxu0 0.0
  %2851 = vmatpush1.msra.mxu0 0.0
  %2852 = vmatprep.subr.mxu0 0.0
  %2853 = vmatpush1.msra.mxu0 0.0
  %2854 = vmatprep.subr.mxu0 0.0
  %2855 = vmatpush1.msra.mxu0 0.0
  %2856 = vmatprep.subr.mxu0 0.0
  %2857 = vmatpush1.msra.mxu0 0.0
  %2858 = vmatprep.subr.mxu0 0.0
  %2859 = vmatpush1.msra.mxu0 0.0
  %2860 = vmatprep.subr.mxu0 0.0
  %2861 = vmatpush1.msra.mxu0 0.0
  %2862 = vmatprep.subr.mxu0 0.0
  %2863 = vmatpush1.msra.mxu0 0.0
  %2864 = vmatprep.subr.mxu0 0.0
  %2865 = vmatpush1.msra.mxu0 0.0
  %2866 = vmatprep.subr.mxu0 0.0
  %2867 = vmatpush1.msra.mxu0 0.0
  %2868 = vmatprep.subr.mxu0 0.0
  %2869 = vmatpush1.msra.mxu0 0.0
  %2870 = vmatprep.subr.mxu0 0.0
  %2871 = vmatpush1.msra.mxu0 0.0
  %2872 = vmatprep.subr.mxu0 0.0
  %2873 = vmatpush1.msra.mxu0 0.0
  %2874 = vmatprep.subr.mxu0 0.0
  %2875 = vmatpush1.msra.mxu0 0.0
  %2876 = vmatprep.subr.mxu0 0.0
  %2877 = vmatpush1.msra.mxu0 0.0
  %2878 = vmatprep.subr.mxu0 0.0
  %2879 = vmatpush1.msra.mxu0 0.0
  %2880 = vmatprep.mubr.f32.mxu0 0.0
  %2881 = vmatmul.mubr.f32.gmra.mrb[0].mxu0 %v2743
  %v2882 = vpop.f32.mrb[0].mxu0
  %v2883 = vadd.f32 0.0, %v2882
  %v2884 = vpop.f32.mrb[0].mxu0
  %v2885 = vadd.f32 0.0, %v2884
  %2886 = vdwg.mxu0
  %v2891 = vcombine.low %v2812, %v2814
  %v2892 = vcombine.low %v2883, %v2885
  %2895 = vst [vmem:[%s8] sm:$0xff] %v2891
  %2896 = vst [vmem:[%s8 + $0x8] sm:$0xff] %v2892
  // Predicated region
  $region34: #{quantum_conv_net.1} parent=0 // pred_check
    _
  $region35: #{quantum_conv_net.1} parent=0 // pred_check_branch
    %2898 = sbr.rel (0) target = $region37
  $region36: #{quantum_conv_net.1} parent=0 // pred_region
    _
  $region37: #{quantum_conv_net.1} parent=0 // pred_fallthru
    _
  // Predicated region
  $region38: #{quantum_conv_net.1} parent=0 // pred_check
    _
  $region39: #{quantum_conv_net.1} parent=0 // pred_check_branch
    %2900 = sbr.rel (0) target = $region41
  $region40: #{quantum_conv_net.1} parent=0 // pred_region
    _
  $region41: #{quantum_conv_net.1} parent=0 // pred_fallthru
    _

</llo_original>
